<compile_context>
chip_gen: v5e
topology: v5e:2x2
jax: 0.10.0
libtpu: 0.0.40
codegen_flags: <defaults>
</compile_context>

<pallas_src>
import functools

import jax
import jax.numpy as jnp
from jax import lax
from jax.experimental import pallas as pl
from jax.experimental.pallas import tpu as pltpu


# ----------------------------------------------------------------------------
# The single fused Pallas kernel (one grid step per GROUP of lane-packed samples)
# ----------------------------------------------------------------------------
def _fused_kernel(xp_ref, w1_ref, cst_ref, w2_ref, o_ref, u_ref,
                  *, n_asg, n_res, n_dn, kd, n12):
    base_acc = 3 * n_asg              # asg-down rows (reused as asg accumulator)
    base_res = base_acc + n_asg
    base_one = base_res + n_res       # 8-row "ones" block (carries the stage-2 bias)
    base_dn = base_one + 8
    base_th = base_dn + n_dn
    base_ph = base_th + 3 * kd

    # Stage 1: ONE lane-dense MXU pass over every joint-preserving linear map of x.
    # u rows = [3x BN-scaled conv_d | asg-down(+folded biases) | residual | ones |
    #           top-level down | 3x theta (1/kd folded) | 3x phi].  All biases ride
    # the appended ones-row of xp, so there are no separate bias operands.
    u_ref[...] = jnp.dot(w1_ref[...], xp_ref[...],
                         preferred_element_type=jnp.float32)

    neg = cst_ref[0]                  # 0 on per-sample diagonal blocks, -1e30 off
    pmask = cst_ref[1]                # block-diagonal part-partition mask

    # PAGCN_Plus adaptive adjacency for all GROUP samples at once (block-diagonal).
    acc = u_ref[base_acc:base_res, :]             # down(x) + folded conv_d/BN biases
    for i in range(3):                            # static unroll over the 3 subsets
        th = u_ref[base_th + i * kd:base_th + (i + 1) * kd, :]      # (kd, L)
        ph = u_ref[base_ph + i * kd:base_ph + (i + 1) * kd, :]      # (kd, L)
        logits = lax.dot_general(th, ph, (((0,), (0,)), ((), ())),
                                 preferred_element_type=jnp.float32) + neg
        mx = jnp.max(logits, axis=0, keepdims=True)                 # softmax dim=-2
        e = jnp.exp(logits - mx)
        attn = e * pl.reciprocal(jnp.sum(e, axis=0, keepdims=True), approx=True)
        adj = attn * pmask + cst_ref[2 + i]                         # (L, L)
        # conv_d(x . adj) == (conv_d(x)) . adj  (1x1 conv and joint mix commute)
        acc = acc + jnp.dot(u_ref[i * n_asg:(i + 1) * n_asg, :], adj,
                            preferred_element_type=jnp.float32)
    # relu(BN(z) + down(x)), written back adjacent to the residual rows so that
    # stage 2 is a single matmul over one contiguous slab.
    u_ref[base_acc:base_res, :] = jnp.maximum(acc, 0.0)

    # Stage 2: tcn (block-Toeplitz 9-tap temporal conv) + residual_s + bias, all in
    # ONE matmul over the [relu(asg) ; residual ; ones] slab.
    o_ref[0:n12, :] = jnp.dot(w2_ref[...], u_ref[base_acc:base_dn, :],
                              preferred_element_type=jnp.float32)
    o_ref[n12:, :] = u_ref[base_dn:base_th, :]    # top-level down(x) block


# ----------------------------------------------------------------------------
# Host-side packing: fold BNs, build kron / block-Toeplitz weights (done once)
# ----------------------------------------------------------------------------
def fold_bn(w, b, gamma, beta, mean, var, eps=1e-5):
    s = gamma / jnp.sqrt(var + eps)
    return w * s, (b - mean) * s + beta


def pack_params(params, a_mat, part_mask, t_len, group):
    asg = params["asg"]
    T = t_len
    v = part_mask.shape[0]
    c_in = params["res_w"].shape[0]
    I_T = jnp.eye(T, dtype=jnp.float32)

    out_asg = asg["conv_d_w"][0].shape[1]
    ic = asg["conv_a_w"][0].shape[1]
    out_res = params["res_w"].shape[1]
    out_tcn = params["tcn_w"].shape[2]
    out_res_s = params["res_s_w"].shape[1]
    out_down = params["down_w"].shape[2]
    kd = ic * T

    # ---- fold every BatchNorm ----
    gamma, beta, mean, var = asg["bn"]
    s_asg = gamma / jnp.sqrt(var + 1e-5)
    sh_asg = beta - mean * s_asg
    wadf, badf = fold_bn(asg["down_w"], asg["down_b"], *asg["down_bn"])
    wres_f, bres_f = fold_bn(params["res_w"], params["res_b"], *params["res_bn"])
    wtcn_f, btcn_f = fold_bn(params["tcn_w"], params["tcn_b"], *params["tcn_bn"])
    wrs_f, brs_f = fold_bn(params["res_s_w"], params["res_s_b"], *params["res_s_bn"])
    wdn_f, bdn_f = fold_bn(params["down_w"][0], params["down_b"], *params["down_bn"])

    # ---- stage-1 weight: every affine map of xr, biases in a trailing column ----
    blocks, biases = [], []

    def add(wmat, bias):
        blocks.append(jnp.kron(wmat.T.astype(jnp.float32), I_T))
        biases.append(jnp.repeat(bias.astype(jnp.float32), T))

    for i in range(3):                                        # BN-scaled conv_d
        add(asg["conv_d_w"][i] * s_asg, jnp.zeros((out_asg,), jnp.float32))
    add(wadf, badf + s_asg * sum(asg["conv_d_b"]) + sh_asg)   # asg-down + folded consts
    add(wres_f, bres_f)                                       # residual
    blocks.append(jnp.zeros((8, c_in * T), jnp.float32))      # 8-row ones/bias block
    biases.append(jnp.array([1.0] + [0.0] * 7, jnp.float32))
    add(wdn_f, bdn_f)                                         # top-level down (k=1)
    for i in range(3):                                        # theta, 1/kd scale folded
        add(asg["conv_a_w"][i] / kd, asg["conv_a_b"][i] / kd)
    for i in range(3):                                        # phi
        add(asg["conv_b_w"][i], asg["conv_b_b"][i])
    w1 = jnp.concatenate([jnp.concatenate(blocks, axis=0),
                          jnp.concatenate(biases)[:, None]], axis=1)   # (R1, C_in*T+1)

    # ---- stage-2 weight: block-Toeplitz temporal conv + residual_s + bias column ----
    k_size = wtcn_f.shape[0]
    pad = (k_size - 1) // 2
    wtcn_big = sum(jnp.kron(wtcn_f[k].T, jnp.eye(T, T, k=k - pad, dtype=jnp.float32))
                   for k in range(k_size))                    # (out_tcn*T, C_out*T)
    wrs_big = jnp.kron(wrs_f.T, I_T)                          # (out_res_s*T, C_out*T)
    b2 = jnp.concatenate([jnp.repeat(btcn_f, T), jnp.repeat(brs_f, T)])
    w2 = jnp.concatenate([jnp.concatenate([wtcn_big, wrs_big], axis=0),
                          b2[:, None],
                          jnp.zeros((b2.shape[0], 7), jnp.float32)], axis=1)

    # ---- lane-packed constants (5, L, L): [softmax -inf mask | part mask | A0..A2],
    #      block-diagonal over the GROUP samples, zero on the lane padding ----
    gv = group * v
    lanes = ((gv + 127) // 128) * 128
    lane = jnp.arange(lanes)
    real = lane < gv
    sid = jnp.where(real, lane // v, -1)
    jid = jnp.where(real, lane % v, 0)
    same = (sid[:, None] == sid[None, :]) & real[:, None] & real[None, :]
    pm = part_mask.astype(jnp.float32)[jid[:, None], jid[None, :]]
    neg = jnp.where(same, 0.0, -1e30).astype(jnp.float32)
    consts = jnp.stack(
        [neg, jnp.where(same, pm, 0.0)]
        + [jnp.where(same, a_mat[i].astype(jnp.float32)[jid[:, None], jid[None, :]], 0.0)
           for i in range(3)]).astype(jnp.float32)

    arrays = dict(w1=w1, w2=w2, consts=consts)
    dims = dict(ic=ic, out_asg=out_asg, out_res=out_res, out_tcn=out_tcn,
                out_res_s=out_res_s, out_down=out_down, group=group, lanes=lanes)
    return arrays, dims


# ----------------------------------------------------------------------------
# Forward wrapper: lane-pack the batch, one pallas_call, unpack
# ----------------------------------------------------------------------------
def part_agcn_tcn_forward(x, w, *, dims):
    """x: (N, C_in, T, V) NCHW  ->  y: (N, out_channels, T, V)."""
    n, c, t, v = x.shape
    c_out = dims["out_tcn"] + dims["out_res_s"] + dims["out_down"]
    G, L = dims["group"], dims["lanes"]
    rows_out = c_out * t
    n_asg, n_res = dims["out_asg"] * t, dims["out_res"] * t
    n_dn, kd = dims["out_down"] * t, dims["ic"] * t
    n12 = (dims["out_tcn"] + dims["out_res_s"]) * t
    r1 = w["w1"].shape[0]

    n_blk = -(-n // G)
    n_pad = n_blk * G
    if n_pad != n:
        x = jnp.pad(x, ((0, n_pad - n), (0, 0), (0, 0), (0, 0)))

    # NCHW -> lane-packed (C*T [+ ones-row], n_blk*L); lane = (sample-in-group, joint)
    xp = jnp.transpose(x.reshape(n_blk, G, c * t, v), (2, 0, 1, 3))
    xp = jnp.pad(xp.reshape(c * t, n_blk, G * v), ((0, 0), (0, 0), (0, L - G * v)))
    xp = jnp.concatenate([xp, jnp.ones((1, n_blk, L), jnp.float32)], axis=0)
    xp = xp.reshape(c * t + 1, n_blk * L)

    kernel = functools.partial(_fused_kernel, n_asg=n_asg, n_res=n_res,
                               n_dn=n_dn, kd=kd, n12=n12)

    cost = pl.CostEstimate(
        flops=int(2 * n_blk * L * (r1 * (c * t + 1)
                                   + 3 * (kd + n_asg) * L
                                   + n12 * w["w2"].shape[1])),
        transcendentals=int(3 * n_blk * L * L),
        bytes_accessed=int(4 * (xp.size + rows_out * n_blk * L
                                + n_blk * (w["w1"].size + w["w2"].size
                                           + w["consts"].size))))

    y_rows = pl.pallas_call(
        kernel,
        out_shape=jax.ShapeDtypeStruct((rows_out, n_blk * L), jnp.float32),
        grid=(n_blk,),
        in_specs=[
            pl.BlockSpec((c * t + 1, L), lambda b: (0, b)),
            pl.BlockSpec(w["w1"].shape, lambda b: (0, 0)),
            pl.BlockSpec(w["consts"].shape, lambda b: (0, 0, 0)),
            pl.BlockSpec(w["w2"].shape, lambda b: (0, 0)),
        ],
        out_specs=pl.BlockSpec((rows_out, L), lambda b: (0, b)),
        scratch_shapes=[pltpu.VMEM((r1, L), jnp.float32)],
        compiler_params=pltpu.CompilerParams(dimension_semantics=("parallel",)),
        cost_estimate=cost,
    )(xp, w["w1"], w["consts"], w["w2"])

    # (C_out*T, n_blk*L) -> drop lane padding -> (N, C_out, T, V)
    y = y_rows.reshape(rows_out, n_blk, L)[:, :, :G * v]
    y = jnp.transpose(y.reshape(rows_out, n_blk, G, v), (1, 2, 0, 3))
    return y.reshape(n_pad, c_out, t, v)[:n]


# ----------------------------------------------------------------------------
# Pure-JAX reference (unpacked math) for validation
# ----------------------------------------------------------------------------
def reference_forward(x, params, a_mat, part_mask):
    n, c, t, v = x.shape
    asg_p = params["asg"]
    ic = asg_p["conv_a_w"][0].shape[1]

    def conv1x1(inp, W, b):
        return jnp.einsum("nctv,co->notv", inp, W) + b[None, :, None, None]

    def bn(y, stats, eps=1e-5):
        g, be, m, va = stats
        s = g / jnp.sqrt(va + eps)
        return y * s[None, :, None, None] + (be - m * s)[None, :, None, None]

    z = 0.0
    for i in range(3):
        theta = conv1x1(x, asg_p["conv_a_w"][i], asg_p["conv_a_b"][i])
        phi = conv1x1(x, asg_p["conv_b_w"][i], asg_p["conv_b_b"][i])
        a1 = jnp.transpose(theta, (0, 3, 1, 2)).reshape(n, v, ic * t)
        a2 = phi.reshape(n, ic * t, v)
        attn = jax.nn.softmax(jnp.matmul(a1, a2) / (ic * t), axis=-2)
        adj = attn * part_mask[None] + a_mat[i][None]
        xa = jnp.matmul(x.reshape(n, c * t, v), adj).reshape(n, c, t, v)
        z = z + conv1x1(xa, asg_p["conv_d_w"][i], asg_p["conv_d_b"][i])
    asg_out = jax.nn.relu(
        bn(z, asg_p["bn"])
        + bn(conv1x1(x, asg_p["down_w"], asg_p["down_b"]), asg_p["down_bn"]))
    res = bn(conv1x1(x, params["res_w"], params["res_b"]), params["res_bn"])
    x0 = jnp.concatenate([asg_out, res], axis=1)

    k = params["tcn_w"].shape[0]
    pad = (k - 1) // 2
    x0p = jnp.pad(x0, ((0, 0), (0, 0), (pad, pad), (0, 0)))
    tcn = sum(jnp.einsum("nctv,co->notv", x0p[:, :, j:j + t, :], params["tcn_w"][j])
              for j in range(k)) + params["tcn_b"][None, :, None, None]
    tcn = bn(tcn, params["tcn_bn"])
    res_s = bn(conv1x1(x0, params["res_s_w"], params["res_s_b"]), params["res_s_bn"])
    down = bn(conv1x1(x, params["down_w"][0], params["down_b"]), params["down_bn"])
    return jnp.concatenate([tcn, res_s, down], axis=1)


# ----------------------------------------------------------------------------
# Deterministic synthetic parameters (same construction as the validated version)
# ----------------------------------------------------------------------------
def init_params(key, c_in, c_out):
    out_asg = c_out // 2
    out_res = c_out - out_asg
    out_tcn = c_out // 3 + 1
    out_res_s = c_out // 3
    out_down = c_out - out_res_s - out_tcn
    ic = max(out_asg // 4, 1)

    keys = iter(jax.random.split(key, 64))

    def w(shape, scale=0.1):
        return scale * jax.random.normal(next(keys), shape, jnp.float32)

    def bn(c):
        return (1.0 + 0.05 * jax.random.normal(next(keys), (c,), jnp.float32),
                0.05 * jax.random.normal(next(keys), (c,), jnp.float32),
                0.05 * jax.random.normal(next(keys), (c,), jnp.float32),
                1.0 + 0.05 * jnp.abs(jax.random.normal(next(keys), (c,), jnp.float32)))

    asg = dict(
        conv_a_w=[w((c_in, ic)) for _ in range(3)],
        conv_a_b=[w((ic,)) for _ in range(3)],
        conv_b_w=[w((c_in, ic)) for _ in range(3)],
        conv_b_b=[w((ic,)) for _ in range(3)],
        conv_d_w=[w((c_in, out_asg)) for _ in range(3)],
        conv_d_b=[w((out_asg,)) for _ in range(3)],
        bn=bn(out_asg),
        down_w=w((c_in, out_asg)), down_b=w((out_asg,)), down_bn=bn(out_asg),
    )
    return dict(
        asg=asg,
        res_w=w((c_in, out_res)), res_b=w((out_res,)), res_bn=bn(out_res),
        tcn_w=w((9, c_out, out_tcn)), tcn_b=w((out_tcn,)), tcn_bn=bn(out_tcn),
        res_s_w=w((c_out, out_res_s)), res_s_b=w((out_res_s,)), res_s_bn=bn(out_res_s),
        down_w=w((1, c_in, out_down)), down_b=w((out_down,)), down_bn=bn(out_down),
    )


if __name__ == "__main__":
    N, C_IN, T, V = 14, 4, 16, 17            # coco -> 17 joints; 14 = 2 lane groups
    OUT_CHANNELS = 12
    GROUP = 7                                # 7 samples * 17 joints = 119 -> 128 lanes

    root = jax.random.PRNGKey(0)
    kp, kx, ka = jax.random.split(root, 3)

    params = init_params(kp, C_IN, OUT_CHANNELS)
    x = jax.random.normal(kx, (N, C_IN, T, V), jnp.float32)
    A = 0.1 * jax.random.normal(ka, (3, V, V), jnp.float32)

    # coco part partition mask: head / L-arm / R-arm / L-leg / R-leg
    labels = jnp.array([0, 0, 0, 0, 0, 1, 2, 1, 2, 1, 2, 3, 4, 3, 4, 3, 4])
    part_mask = (labels[:, None] == labels[None, :]).astype(jnp.float32)

    weights, dims = pack_params(params, A, part_mask, T, GROUP)
    fwd = jax.jit(functools.partial(part_agcn_tcn_forward, dims=dims))

    y = jax.block_until_ready(fwd(x, weights))
    assert y.shape == (N, OUT_CHANNELS, T, V), y.shape
    assert bool(jnp.all(jnp.isfinite(y)))

    # validate against the unpacked pure-JAX reference
    y_ref = reference_forward(x, params, A, part_mask)
    err = float(jnp.max(jnp.abs(y - y_ref)))
    assert err < 5e-2 * (1.0 + float(jnp.max(jnp.abs(y_ref)))), err
    print("KERNEL_OK")
</pallas_src>

<mosaic_0001>
module attributes {stable_mosaic.version = 11 : i64} {
  func.func @_fused_kernel(%arg0: i32, %arg1: memref<65x128xf32, #tpu.memory_space<vmem>>, %arg2: memref<632x65xf32, #tpu.memory_space<vmem>>, %arg3: memref<5x128x128xf32, #tpu.memory_space<vmem>>, %arg4: memref<144x200xf32, #tpu.memory_space<vmem>>, %arg5: memref<192x128xf32, #tpu.memory_space<vmem>>, %arg6: memref<632x128xf32, #tpu.memory_space<vmem>>) attributes {dimension_semantics = [#tpu.dimension_semantics<parallel>], iteration_bounds = array<i64: 2>, scalar_prefetch = 0 : i64, scratch_operands = 1 : i64, tpu.core_type = #tpu.core_type<tc>, window_params = [{transform_indices = @transform_0, window_bounds = array<i64: 65, 128>}, {pipeline_mode = #tpu.pipeline_mode<synchronous>, transform_indices = @transform_1, window_bounds = array<i64: 632, 65>}, {pipeline_mode = #tpu.pipeline_mode<synchronous>, transform_indices = @transform_2, window_bounds = array<i64: 5, 128, 128>}, {pipeline_mode = #tpu.pipeline_mode<synchronous>, transform_indices = @transform_3, window_bounds = array<i64: 144, 200>}, {transform_indices = @transform_4, window_bounds = array<i64: 192, 128>}]} {
    %c0 = arith.constant 0 : index
    %c0_0 = arith.constant 0 : index
    %0 = vector.load %arg2[%c0, %c0_0] : memref<632x65xf32, #tpu.memory_space<vmem>>, vector<632x65xf32>
    %c0_1 = arith.constant 0 : index
    %c0_2 = arith.constant 0 : index
    %1 = vector.load %arg1[%c0_1, %c0_2] : memref<65x128xf32, #tpu.memory_space<vmem>>, vector<65x128xf32>
    %cst = arith.constant dense<0.000000e+00> : vector<632x128xf32>
    %2 = tpu.matmul %0, %1, %cst {dimension_numbers = #tpu.dot_dimension_numbers<[1], [0], [0], [1], [0, 0, 1, 1], [], []>} : vector<632x65xf32>, vector<65x128xf32>, vector<632x128xf32> -> vector<632x128xf32>
    %c0_3 = arith.constant 0 : index
    %c0_4 = arith.constant 0 : index
    %3 = vector.load %arg6[%c0_3, %c0_4] : memref<632x128xf32, #tpu.memory_space<vmem>>, vector<632x128xf32>
    tpu.vector_store %arg6[%c0_3, %c0_4], %2 {strides = array<i32>} : memref<632x128xf32, #tpu.memory_space<vmem>>, vector<632x128xf32>,
    %c0_5 = arith.constant 0 : index
    %c0_6 = arith.constant 0 : index
    %c0_7 = arith.constant 0 : index
    %4 = vector.load %arg3[%c0_5, %c0_6, %c0_7] : memref<5x128x128xf32, #tpu.memory_space<vmem>>, vector<1x128x128xf32>
    %5 = vector.shape_cast %4 : vector<1x128x128xf32> to vector<128x128xf32>
    %c1 = arith.constant 1 : index
    %c0_8 = arith.constant 0 : index
    %c0_9 = arith.constant 0 : index
    %6 = vector.load %arg3[%c1, %c0_8, %c0_9] : memref<5x128x128xf32, #tpu.memory_space<vmem>>, vector<1x128x128xf32>
    %7 = vector.shape_cast %6 : vector<1x128x128xf32> to vector<128x128xf32>
    %c288 = arith.constant 288 : index
    %c0_10 = arith.constant 0 : index
    %8 = vector.load %arg6[%c288, %c0_10] : memref<632x128xf32, #tpu.memory_space<vmem>>, vector<96x128xf32>
    %c536 = arith.constant 536 : index
    %c0_11 = arith.constant 0 : index
    %9 = vector.load %arg6[%c536, %c0_11] : memref<632x128xf32, #tpu.memory_space<vmem>>, vector<16x128xf32>
    %c584 = arith.constant 584 : index
    %c0_12 = arith.constant 0 : index
    %10 = vector.load %arg6[%c584, %c0_12] : memref<632x128xf32, #tpu.memory_space<vmem>>, vector<16x128xf32>
    %cst_13 = arith.constant dense<0.000000e+00> : vector<128x128xf32>
    %11 = tpu.matmul %9, %10, %cst_13 {dimension_numbers = #tpu.dot_dimension_numbers<[0], [0], [1], [1], [0, 1, 1, 1], [], []>} : vector<16x128xf32>, vector<16x128xf32>, vector<128x128xf32> -> vector<128x128xf32>
    %12 = arith.addf %11, %5 : vector<128x128xf32>
    %cst_14 = arith.constant dense<0xFF800000> : vector<128xf32>
    %13 = vector.multi_reduction <maximumf>, %12, %cst_14 [0] : vector<128x128xf32> to vector<128xf32>
    %14 = vector.shape_cast %13 : vector<128xf32> to vector<1x128xf32>
    %15 = vector.broadcast %14 : vector<1x128xf32> to vector<128x128xf32>
    %16 = arith.subf %12, %15 : vector<128x128xf32>
    %17 = math.exp %16 : vector<128x128xf32>
    %cst_15 = arith.constant dense<0.000000e+00> : vector<128xf32>
    %18 = vector.multi_reduction <add>, %17, %cst_15 [0] : vector<128x128xf32> to vector<128xf32>
    %19 = vector.shape_cast %18 : vector<128xf32> to vector<1x128xf32>
    %20 = tpu.reciprocal %19 {approx = true} : vector<1x128xf32> -> vector<1x128xf32>
    %21 = vector.broadcast %20 : vector<1x128xf32> to vector<128x128xf32>
    %22 = arith.mulf %17, %21 : vector<128x128xf32>
    %23 = arith.mulf %22, %7 : vector<128x128xf32>
    %c2 = arith.constant 2 : index
    %c0_16 = arith.constant 0 : index
    %c0_17 = arith.constant 0 : index
    %24 = vector.load %arg3[%c2, %c0_16, %c0_17] : memref<5x128x128xf32, #tpu.memory_space<vmem>>, vector<1x128x128xf32>
    %25 = vector.shape_cast %24 : vector<1x128x128xf32> to vector<128x128xf32>
    %26 = arith.addf %23, %25 : vector<128x128xf32>
    %c0_18 = arith.constant 0 : index
    %c0_19 = arith.constant 0 : index
    %27 = vector.load %arg6[%c0_18, %c0_19] : memref<632x128xf32, #tpu.memory_space<vmem>>, vector<96x128xf32>
    %cst_20 = arith.constant dense<0.000000e+00> : vector<96x128xf32>
    %28 = tpu.matmul %27, %26, %cst_20 {dimension_numbers = #tpu.dot_dimension_numbers<[1], [0], [0], [1], [0, 0, 1, 1], [], []>} : vector<96x128xf32>, vector<128x128xf32>, vector<96x128xf32> -> vector<96x128xf32>
    %29 = arith.addf %8, %28 : vector<96x128xf32>
    %c552 = arith.constant 552 : index
    %c0_21 = arith.constant 0 : index
    %30 = vector.load %arg6[%c552, %c0_21] : memref<632x128xf32, #tpu.memory_space<vmem>>, vector<16x128xf32>
    %c600 = arith.constant 600 : index
    %c0_22 = arith.constant 0 : index
    %31 = vector.load %arg6[%c600, %c0_22] : memref<632x128xf32, #tpu.memory_space<vmem>>, vector<16x128xf32>
    %cst_23 = arith.constant dense<0.000000e+00> : vector<128x128xf32>
    %32 = tpu.matmul %30, %31, %cst_23 {dimension_numbers = #tpu.dot_dimension_numbers<[0], [0], [1], [1], [0, 1, 1, 1], [], []>} : vector<16x128xf32>, vector<16x128xf32>, vector<128x128xf32> -> vector<128x128xf32>
    %33 = arith.addf %32, %5 : vector<128x128xf32>
    %cst_24 = arith.constant dense<0xFF800000> : vector<128xf32>
    %34 = vector.multi_reduction <maximumf>, %33, %cst_24 [0] : vector<128x128xf32> to vector<128xf32>
    %35 = vector.shape_cast %34 : vector<128xf32> to vector<1x128xf32>
    %36 = vector.broadcast %35 : vector<1x128xf32> to vector<128x128xf32>
    %37 = arith.subf %33, %36 : vector<128x128xf32>
    %38 = math.exp %37 : vector<128x128xf32>
    %cst_25 = arith.constant dense<0.000000e+00> : vector<128xf32>
    %39 = vector.multi_reduction <add>, %38, %cst_25 [0] : vector<128x128xf32> to vector<128xf32>
    %40 = vector.shape_cast %39 : vector<128xf32> to vector<1x128xf32>
    %41 = tpu.reciprocal %40 {approx = true} : vector<1x128xf32> -> vector<1x128xf32>
    %42 = vector.broadcast %41 : vector<1x128xf32> to vector<128x128xf32>
    %43 = arith.mulf %38, %42 : vector<128x128xf32>
    %44 = arith.mulf %43, %7 : vector<128x128xf32>
    %c3 = arith.constant 3 : index
    %c0_26 = arith.constant 0 : index
    %c0_27 = arith.constant 0 : index
    %45 = vector.load %arg3[%c3, %c0_26, %c0_27] : memref<5x128x128xf32, #tpu.memory_space<vmem>>, vector<1x128x128xf32>
    %46 = vector.shape_cast %45 : vector<1x128x128xf32> to vector<128x128xf32>
    %47 = arith.addf %44, %46 : vector<128x128xf32>
    %c96 = arith.constant 96 : index
    %c0_28 = arith.constant 0 : index
    %48 = vector.load %arg6[%c96, %c0_28] : memref<632x128xf32, #tpu.memory_space<vmem>>, vector<96x128xf32>
    %cst_29 = arith.constant dense<0.000000e+00> : vector<96x128xf32>
    %49 = tpu.matmul %48, %47, %cst_29 {dimension_numbers = #tpu.dot_dimension_numbers<[1], [0], [0], [1], [0, 0, 1, 1], [], []>} : vector<96x128xf32>, vector<128x128xf32>, vector<96x128xf32> -> vector<96x128xf32>
    %50 = arith.addf %29, %49 : vector<96x128xf32>
    %c568 = arith.constant 568 : index
    %c0_30 = arith.constant 0 : index
    %51 = vector.load %arg6[%c568, %c0_30] : memref<632x128xf32, #tpu.memory_space<vmem>>, vector<16x128xf32>
    %c616 = arith.constant 616 : index
    %c0_31 = arith.constant 0 : index
    %52 = vector.load %arg6[%c616, %c0_31] : memref<632x128xf32, #tpu.memory_space<vmem>>, vector<16x128xf32>
    %cst_32 = arith.constant dense<0.000000e+00> : vector<128x128xf32>
    %53 = tpu.matmul %51, %52, %cst_32 {dimension_numbers = #tpu.dot_dimension_numbers<[0], [0], [1], [1], [0, 1, 1, 1], [], []>} : vector<16x128xf32>, vector<16x128xf32>, vector<128x128xf32> -> vector<128x128xf32>
    %54 = arith.addf %53, %5 : vector<128x128xf32>
    %cst_33 = arith.constant dense<0xFF800000> : vector<128xf32>
    %55 = vector.multi_reduction <maximumf>, %54, %cst_33 [0] : vector<128x128xf32> to vector<128xf32>
    %56 = vector.shape_cast %55 : vector<128xf32> to vector<1x128xf32>
    %57 = vector.broadcast %56 : vector<1x128xf32> to vector<128x128xf32>
    %58 = arith.subf %54, %57 : vector<128x128xf32>
    %59 = math.exp %58 : vector<128x128xf32>
    %cst_34 = arith.constant dense<0.000000e+00> : vector<128xf32>
    %60 = vector.multi_reduction <add>, %59, %cst_34 [0] : vector<128x128xf32> to vector<128xf32>
    %61 = vector.shape_cast %60 : vector<128xf32> to vector<1x128xf32>
    %62 = tpu.reciprocal %61 {approx = true} : vector<1x128xf32> -> vector<1x128xf32>
    %63 = vector.broadcast %62 : vector<1x128xf32> to vector<128x128xf32>
    %64 = arith.mulf %59, %63 : vector<128x128xf32>
    %65 = arith.mulf %64, %7 : vector<128x128xf32>
    %c4 = arith.constant 4 : index
    %c0_35 = arith.constant 0 : index
    %c0_36 = arith.constant 0 : index
    %66 = vector.load %arg3[%c4, %c0_35, %c0_36] : memref<5x128x128xf32, #tpu.memory_space<vmem>>, vector<1x128x128xf32>
    %67 = vector.shape_cast %66 : vector<1x128x128xf32> to vector<128x128xf32>
    %68 = arith.addf %65, %67 : vector<128x128xf32>
    %c192 = arith.constant 192 : index
    %c0_37 = arith.constant 0 : index
    %69 = vector.load %arg6[%c192, %c0_37] : memref<632x128xf32, #tpu.memory_space<vmem>>, vector<96x128xf32>
    %cst_38 = arith.constant dense<0.000000e+00> : vector<96x128xf32>
    %70 = tpu.matmul %69, %68, %cst_38 {dimension_numbers = #tpu.dot_dimension_numbers<[1], [0], [0], [1], [0, 0, 1, 1], [], []>} : vector<96x128xf32>, vector<128x128xf32>, vector<96x128xf32> -> vector<96x128xf32>
    %71 = arith.addf %50, %70 : vector<96x128xf32>
    %cst_39 = arith.constant 0.000000e+00 : f32
    %72 = vector.broadcast %cst_39 : f32 to vector<96x128xf32>
    %73 = arith.maximumf %71, %72 : vector<96x128xf32>
    %c288_40 = arith.constant 288 : index
    %c0_41 = arith.constant 0 : index
    %74 = vector.load %arg6[%c288_40, %c0_41] : memref<632x128xf32, #tpu.memory_space<vmem>>, vector<96x128xf32>
    tpu.vector_store %arg6[%c288_40, %c0_41], %73 {strides = array<i32>} : memref<632x128xf32, #tpu.memory_space<vmem>>, vector<96x128xf32>,
    %c0_42 = arith.constant 0 : index
    %c0_43 = arith.constant 0 : index
    %75 = vector.load %arg4[%c0_42, %c0_43] : memref<144x200xf32, #tpu.memory_space<vmem>>, vector<144x200xf32>
    %c288_44 = arith.constant 288 : index
    %c0_45 = arith.constant 0 : index
    %76 = vector.load %arg6[%c288_44, %c0_45] : memref<632x128xf32, #tpu.memory_space<vmem>>, vector<200x128xf32>
    %cst_46 = arith.constant dense<0.000000e+00> : vector<144x128xf32>
    %77 = tpu.matmul %75, %76, %cst_46 {dimension_numbers = #tpu.dot_dimension_numbers<[1], [0], [0], [1], [0, 0, 1, 1], [], []>} : vector<144x200xf32>, vector<200x128xf32>, vector<144x128xf32> -> vector<144x128xf32>
    %c0_47 = arith.constant 0 : index
    %c0_48 = arith.constant 0 : index
    %78 = vector.load %arg5[%c0_47, %c0_48] : memref<192x128xf32, #tpu.memory_space<vmem>>, vector<144x128xf32>
    tpu.vector_store %arg5[%c0_47, %c0_48], %77 {strides = array<i32>} : memref<192x128xf32, #tpu.memory_space<vmem>>, vector<144x128xf32>,
    %c488 = arith.constant 488 : index
    %c0_49 = arith.constant 0 : index
    %79 = vector.load %arg6[%c488, %c0_49] : memref<632x128xf32, #tpu.memory_space<vmem>>, vector<48x128xf32>
    %c144 = arith.constant 144 : index
    %c0_50 = arith.constant 0 : index
    %80 = vector.load %arg5[%c144, %c0_50] : memref<192x128xf32, #tpu.memory_space<vmem>>, vector<48x128xf32>
    tpu.vector_store %arg5[%c144, %c0_50], %79 {strides = array<i32>} : memref<192x128xf32, #tpu.memory_space<vmem>>, vector<48x128xf32>,
    return
  }
  func.func @transform_0(%arg0: i32) -> (i32, i32) {
    %c0_i32 = arith.constant 0 : i32
    %c0_i32_0 = arith.constant 0 : i32
    return %c0_i32, %arg0 : i32, i32
  }
  func.func @transform_1(%arg0: i32) -> (i32, i32) {
    %c0_i32 = arith.constant 0 : i32
    %c0_i32_0 = arith.constant 0 : i32
    %c0_i32_1 = arith.constant 0 : i32
    return %c0_i32, %c0_i32_0 : i32, i32
  }
  func.func @transform_2(%arg0: i32) -> (i32, i32, i32) {
    %c0_i32 = arith.constant 0 : i32
    %c0_i32_0 = arith.constant 0 : i32
    %c0_i32_1 = arith.constant 0 : i32
    %c0_i32_2 = arith.constant 0 : i32
    return %c0_i32, %c0_i32_0, %c0_i32_1 : i32, i32, i32
  }
  func.func @transform_3(%arg0: i32) -> (i32, i32) {
    %c0_i32 = arith.constant 0 : i32
    %c0_i32_0 = arith.constant 0 : i32
    %c0_i32_1 = arith.constant 0 : i32
    return %c0_i32, %c0_i32_0 : i32, i32
  }
  func.func @transform_4(%arg0: i32) -> (i32, i32) {
    %c0_i32 = arith.constant 0 : i32
    %c0_i32_0 = arith.constant 0 : i32
    return %c0_i32, %arg0 : i32, i32
  }
}

</mosaic_0001>

<llo_original>
// kernel: part_agcn_tcn_forward.1
$region0: #{part_agcn_tcn_forward.1}
  #allocation0 [shape = 'u32[]', space=smem, size = 0x4, offset = 0x4, fixed_abs, tag = 'smem constant byte address 0x4 - core index']
  #allocation1 [shape = 'u32[72,128]{1,0:T(1,128)}', space=vmem, size = 0x9000, scoped, tag = 'internal scratch']
  #allocation2 [shape = 'f32[632,128]{1,0:T(8,128)}', space=vmem, size = 0x4f000, scoped, tag = 'scratch operand']
  %s0 = inlined_call_operand.vmem [shape: f32[65,256], index: 0, kind: input, shape index: {}]
  %s1 = inlined_call_operand.vmem [shape: f32[632,65], index: 1, kind: input, shape index: {}]
  %s2 = inlined_call_operand.vmem [shape: f32[5,128,128], index: 2, kind: input, shape index: {}]
  %s3 = inlined_call_operand.vmem [shape: f32[144,200], index: 3, kind: input, shape index: {}]
  %s4 = inlined_call_operand.vmem [shape: f32[192,256], index: 4, kind: output, shape index: {}]
  %s5 = sld [smem:[#allocation0]]
  $region121: #{part_agcn_tcn_forward.1} parent=0
    _
  %s7 = ssub.s32 1, %s5
  %s8 = scalar_select 0, %s7, %s5
  $region1: #{part_agcn_tcn_forward.1} parent=0
    #allocation3 [shape = 'u8[73728]{0}', space=vmem, size = 0x12000, scoped, tag = 'input window, operand 0']
    #allocation4 [shape = 'u8[196608]{0}', space=vmem, size = 0x30000, scoped, tag = 'output window, operand 0']
    loop: start=0, step=1, limit=4
    $region2: #{part_agcn_tcn_forward.1} parent=1 // loop_pre_header
      _
    $region3: #{part_agcn_tcn_forward.1} parent=1 // loop_header
      %s10 = sphi 0, %s14
      %p11 = scmp.ge.s32.totalorder %s10, 4
      %s20 = sphi 0, %s22
      %s23 = sphi 0, %s20
      %s24 = sphi 0, %s23
      %s40 = sphi 0, %s24
      %s44 = sphi 0, %s44
      %s46 = sphi 0, %s44
      %s47 = sphi 0, %s46
      %s61 = sphi 0, %s47
      %s65 = sphi 0, %s65
      %s67 = sphi 0, %s65
      %s68 = sphi 0, %s67
      %s82 = sphi 0, %s68
      %s86 = sphi 0, %s86
      %s88 = sphi 0, %s86
      %s89 = sphi 0, %s88
      %s103 = sphi 0, %s89
      %s109 = sphi 0, %s111
      %s112 = sphi 0, %s109
      %s113 = sphi 0, %s112
      %s129 = sphi 0, %s113
    $region4: #{part_agcn_tcn_forward.1} parent=1 // loop_header_branch
      %13 = sbr.rel (%p11) target = $region8
    $region5: #{part_agcn_tcn_forward.1} parent=1 // loop_body
      %s15 = ssub.s32 %s10, 1
      %s16 = ssub.s32 %s10, 2
      %s17 = sadd.s32 %s10, 1
      %s18 = ssub.s32 %s10, %s17
      %p19 = scmp.eq.s32.totalorder %s18, 0
      %s21 = sadd.s32 %s20, 1
      %s22 = scalar_select %p19, %s20, %s21
      %p25 = pneg %p19
      %p26 = scmp.eq.s32.totalorder %s10, 1
      %p27 = por %p25, %p26
      %p28 = scmp.ne.s32.totalorder %s20, %s23
      %p29 = scmp.eq.s32.totalorder %s10, 0
      %p30 = por %p28, %p29
      %p31 = scmp.ne.s32.totalorder %s20, %s23
      %p32 = scmp.eq.s32.totalorder %s15, 1
      %p33 = por %p31, %p32
      %p34 = scmp.ne.s32.totalorder %s23, %s24
      %p35 = scmp.eq.s32.totalorder %s15, 0
      %p36 = por %p34, %p35
      %p37 = scmp.ne.s32.totalorder %s23, %s24
      %p38 = scmp.eq.s32.totalorder %s16, 1
      %p39 = por %p37, %p38
      %p41 = scmp.ne.s32.totalorder %s24, %s40
      %p42 = scmp.eq.s32.totalorder %s16, 0
      %p43 = por %p41, %p42
      %s45 = sadd.s32 %s44, 1
      %p48 = scmp.eq.s32.totalorder %s10, 1
      %p49 = scmp.ne.s32.totalorder %s44, %s46
      %p50 = scmp.eq.s32.totalorder %s10, 0
      %p51 = por %p49, %p50
      %p52 = scmp.ne.s32.totalorder %s44, %s46
      %p53 = scmp.eq.s32.totalorder %s15, 1
      %p54 = por %p52, %p53
      %p55 = scmp.ne.s32.totalorder %s46, %s47
      %p56 = scmp.eq.s32.totalorder %s15, 0
      %p57 = por %p55, %p56
      %p58 = scmp.ne.s32.totalorder %s46, %s47
      %p59 = scmp.eq.s32.totalorder %s16, 1
      %p60 = por %p58, %p59
      %p62 = scmp.ne.s32.totalorder %s47, %s61
      %p63 = scmp.eq.s32.totalorder %s16, 0
      %p64 = por %p62, %p63
      %s66 = sadd.s32 %s65, 1
      %p69 = scmp.eq.s32.totalorder %s10, 1
      %p70 = scmp.ne.s32.totalorder %s65, %s67
      %p71 = scmp.eq.s32.totalorder %s10, 0
      %p72 = por %p70, %p71
      %p73 = scmp.ne.s32.totalorder %s65, %s67
      %p74 = scmp.eq.s32.totalorder %s15, 1
      %p75 = por %p73, %p74
      %p76 = scmp.ne.s32.totalorder %s67, %s68
      %p77 = scmp.eq.s32.totalorder %s15, 0
      %p78 = por %p76, %p77
      %p79 = scmp.ne.s32.totalorder %s67, %s68
      %p80 = scmp.eq.s32.totalorder %s16, 1
      %p81 = por %p79, %p80
      %p83 = scmp.ne.s32.totalorder %s68, %s82
      %p84 = scmp.eq.s32.totalorder %s16, 0
      %p85 = por %p83, %p84
      %s87 = sadd.s32 %s86, 1
      %p90 = scmp.eq.s32.totalorder %s10, 1
      %p91 = scmp.ne.s32.totalorder %s86, %s88
      %p92 = scmp.eq.s32.totalorder %s10, 0
      %p93 = por %p91, %p92
      %p94 = scmp.ne.s32.totalorder %s86, %s88
      %p95 = scmp.eq.s32.totalorder %s15, 1
      %p96 = por %p94, %p95
      %p97 = scmp.ne.s32.totalorder %s88, %s89
      %p98 = scmp.eq.s32.totalorder %s15, 0
      %p99 = por %p97, %p98
      %p100 = scmp.ne.s32.totalorder %s88, %s89
      %p101 = scmp.eq.s32.totalorder %s16, 1
      %p102 = por %p100, %p101
      %p104 = scmp.ne.s32.totalorder %s89, %s103
      %p105 = scmp.eq.s32.totalorder %s16, 0
      %p106 = por %p104, %p105
      %s107 = ssub.s32 %s10, %s17
      %p108 = scmp.eq.s32.totalorder %s107, 0
      %s110 = sadd.s32 %s109, 1
      %s111 = scalar_select %p108, %s109, %s110
      %p114 = pneg %p108
      %p115 = scmp.eq.s32.totalorder %s10, 1
      %p116 = por %p114, %p115
      %p117 = scmp.ne.s32.totalorder %s109, %s112
      %p118 = scmp.eq.s32.totalorder %s10, 0
      %p119 = por %p117, %p118
      %p120 = scmp.ne.s32.totalorder %s109, %s112
      %p121 = scmp.eq.s32.totalorder %s15, 1
      %p122 = por %p120, %p121
      %p123 = scmp.ne.s32.totalorder %s112, %s113
      %p124 = scmp.eq.s32.totalorder %s15, 0
      %p125 = por %p123, %p124
      %p126 = scmp.ne.s32.totalorder %s112, %s113
      %p127 = scmp.eq.s32.totalorder %s16, 1
      %p128 = por %p126, %p127
      %p130 = scmp.ne.s32.totalorder %s113, %s129
      %p131 = scmp.eq.s32.totalorder %s16, 0
      %p132 = por %p130, %p131
      %p133 = scmp.le.s32.totalorder 1, %s10
      %p134 = scmp.lt.s32.totalorder %s10, 3
      %p135 = pnand %p133, %p134
      %p136 = pneg %p135
      // Predicated region
      $region9: #{part_agcn_tcn_forward.1} parent=5 // pred_check
        _
      $region10: #{part_agcn_tcn_forward.1} parent=5 // pred_check_branch
        %138 = sbr.rel (%p135) target = $region12
      $region11: #{part_agcn_tcn_forward.1} parent=5 // pred_region
        %s139 = ssub.s32 %s10, 1
        // Predicated region
        $region13: #{part_agcn_tcn_forward.1} parent=11 // pred_check
          %p140 = pneg %p57
        $region14: #{part_agcn_tcn_forward.1} parent=11 // pred_check_branch
          %142 = sbr.rel (%p140) target = $region16
        $region15: #{part_agcn_tcn_forward.1} parent=11 // pred_region
          _
        $region16: #{part_agcn_tcn_forward.1} parent=11 // pred_fallthru
          _
        // Predicated region
        $region17: #{part_agcn_tcn_forward.1} parent=11 // pred_check
          %p143 = pneg %p78
        $region18: #{part_agcn_tcn_forward.1} parent=11 // pred_check_branch
          %145 = sbr.rel (%p143) target = $region20
        $region19: #{part_agcn_tcn_forward.1} parent=11 // pred_region
          _
        $region20: #{part_agcn_tcn_forward.1} parent=11 // pred_fallthru
          _
        // Predicated region
        $region21: #{part_agcn_tcn_forward.1} parent=11 // pred_check
          %p146 = pneg %p99
        $region22: #{part_agcn_tcn_forward.1} parent=11 // pred_check_branch
          %148 = sbr.rel (%p146) target = $region24
        $region23: #{part_agcn_tcn_forward.1} parent=11 // pred_region
          _
        $region24: #{part_agcn_tcn_forward.1} parent=11 // pred_fallthru
          _
      $region12: #{part_agcn_tcn_forward.1} parent=5 // pred_fallthru
        _
      %p149 = scmp.lt.s32.totalorder %s10, 2
      // Predicated region
      $region25: #{part_agcn_tcn_forward.1} parent=5 // pred_check
        %p150 = pneg %p149
      $region26: #{part_agcn_tcn_forward.1} parent=5 // pred_check_branch
        %152 = sbr.rel (%p150) target = $region28
      $region27: #{part_agcn_tcn_forward.1} parent=5 // pred_region
        // Predicated region
        $region29: #{part_agcn_tcn_forward.1} parent=27 // pred_check
          %p153 = pneg %p30
        $region30: #{part_agcn_tcn_forward.1} parent=27 // pred_check_branch
          %155 = sbr.rel (%p153) target = $region32
        $region31: #{part_agcn_tcn_forward.1} parent=27 // pred_region
          %s156 = sand.u32 %s20, 1
          %s157 = sand.u32 %s20, 1
          %s158 = smul.addr %s157, 72
          %s159 = scalar_lea.vmem [#allocation3], %s158
          %s160 = smul.addr %s10, 8
          %s161 = scalar_lea.vmem %s0, %s160
          // Predicated region
          $region33: #{part_agcn_tcn_forward.1} parent=31 // pred_check
            _
          $region34: #{part_agcn_tcn_forward.1} parent=31 // pred_check_branch
            %163 = sbr.rel (0) target = $region36
          $region35: #{part_agcn_tcn_forward.1} parent=31 // pred_region
            // Predicated region
            $region37: #{part_agcn_tcn_forward.1} parent=35 // pred_check
              _
            $region38: #{part_agcn_tcn_forward.1} parent=35 // pred_check_branch
              %165 = sbr.rel (0) target = $region40
            $region39: #{part_agcn_tcn_forward.1} parent=35 // pred_region
              // Predicated region
              $region52: #{part_agcn_tcn_forward.1} parent=39 // pred_check
                _
              $region53: #{part_agcn_tcn_forward.1} parent=39 // pred_check_branch
                %197 = sbr.rel (0) target = $region55
              $region54: #{part_agcn_tcn_forward.1} parent=39 // pred_region
                loop: start=0, step=1, limit=1
                $region56: #{part_agcn_tcn_forward.1} parent=54 // loop_pre_header
                  _
                $region57: #{part_agcn_tcn_forward.1} parent=54 // loop_header
                  %s199 = sphi 0, %s203
                  %p200 = scmp.ge.s32.totalorder %s199, 1
                  %s204 = sphi %s161, %s161
                  %s205 = sphi %s159, %s159
                $region58: #{part_agcn_tcn_forward.1} parent=54 // loop_header_branch
                  %202 = sbr.rel (%p200) target = $region62
                $region59: #{part_agcn_tcn_forward.1} parent=54 // loop_body
                  %v206 = vld [vmem:[%s204] sm:$0xff]
                  %207 = vst [vmem:[%s205] sm:$0xff] %v206
                  %v208 = vld [vmem:[%s204 + $0x10] sm:$0xff]
                  %209 = vst [vmem:[%s205 + $0x8] sm:$0xff] %v208
                  %v210 = vld [vmem:[%s204 + $0x20] sm:$0xff]
                  %211 = vst [vmem:[%s205 + $0x10] sm:$0xff] %v210
                  %v212 = vld [vmem:[%s204 + $0x30] sm:$0xff]
                  %213 = vst [vmem:[%s205 + $0x18] sm:$0xff] %v212
                  %v214 = vld [vmem:[%s204 + $0x40] sm:$0xff]
                  %215 = vst [vmem:[%s205 + $0x20] sm:$0xff] %v214
                  %v216 = vld [vmem:[%s204 + $0x50] sm:$0xff]
                  %217 = vst [vmem:[%s205 + $0x28] sm:$0xff] %v216
                  %v218 = vld [vmem:[%s204 + $0x60] sm:$0xff]
                  %219 = vst [vmem:[%s205 + $0x30] sm:$0xff] %v218
                  %v220 = vld [vmem:[%s204 + $0x70] sm:$0xff]
                  %221 = vst [vmem:[%s205 + $0x38] sm:$0xff] %v220
                  %v222 = vld [vmem:[%s204 + $0x80] sm:$0xff]
                  %223 = vst [vmem:[%s205 + $0x40] sm:$0xff] %v222
                $region60: #{part_agcn_tcn_forward.1} parent=54 // loop_footer
                  %s203 = sadd.s32 1, %s199
                $region61: #{part_agcn_tcn_forward.1} parent=54 // loop_footer_branch
                  %198 = sbr.rel target = $region57
                $region62: #{part_agcn_tcn_forward.1} parent=54 // loop_exit
                  _
              $region55: #{part_agcn_tcn_forward.1} parent=39 // pred_fallthru
                _
              // Predicated region
              $region63: #{part_agcn_tcn_forward.1} parent=39 // pred_check
                _
              $region64: #{part_agcn_tcn_forward.1} parent=39 // pred_check_branch
                %225 = sbr.rel target = $region66
              $region65: #{part_agcn_tcn_forward.1} parent=39 // pred_region
                _
              $region66: #{part_agcn_tcn_forward.1} parent=39 // pred_fallthru
                _
            $region40: #{part_agcn_tcn_forward.1} parent=35 // pred_fallthru
              _
            // Predicated region
            $region41: #{part_agcn_tcn_forward.1} parent=35 // pred_check
              _
            $region42: #{part_agcn_tcn_forward.1} parent=35 // pred_check_branch
              %167 = sbr.rel target = $region44
            $region43: #{part_agcn_tcn_forward.1} parent=35 // pred_region
              %s169 = ssub.s32 256, 1
              loop: start=0, step=1, limit=1
              $region45: #{part_agcn_tcn_forward.1} parent=43 // loop_pre_header
                _
              $region46: #{part_agcn_tcn_forward.1} parent=43 // loop_header
                %s171 = sphi 0, %s175
                %p172 = scmp.ge.s32.totalorder %s171, 1
                %s176 = sphi %s161, %s161
                %s177 = sphi %s159, %s159
              $region47: #{part_agcn_tcn_forward.1} parent=43 // loop_header_branch
                %174 = sbr.rel (%p172) target = $region51
              $region48: #{part_agcn_tcn_forward.1} parent=43 // loop_body
                %v178 = vld [vmem:[%s176] sm:%s169]
                %179 = vst [vmem:[%s177] sm:%s169] %v178
                %v180 = vld [vmem:[%s176 + $0x10] sm:%s169]
                %181 = vst [vmem:[%s177 + $0x8] sm:%s169] %v180
                %v182 = vld [vmem:[%s176 + $0x20] sm:%s169]
                %183 = vst [vmem:[%s177 + $0x10] sm:%s169] %v182
                %v184 = vld [vmem:[%s176 + $0x30] sm:%s169]
                %185 = vst [vmem:[%s177 + $0x18] sm:%s169] %v184
                %v186 = vld [vmem:[%s176 + $0x40] sm:%s169]
                %187 = vst [vmem:[%s177 + $0x20] sm:%s169] %v186
                %v188 = vld [vmem:[%s176 + $0x50] sm:%s169]
                %189 = vst [vmem:[%s177 + $0x28] sm:%s169] %v188
                %v190 = vld [vmem:[%s176 + $0x60] sm:%s169]
                %191 = vst [vmem:[%s177 + $0x30] sm:%s169] %v190
                %v192 = vld [vmem:[%s176 + $0x70] sm:%s169]
                %193 = vst [vmem:[%s177 + $0x38] sm:%s169] %v192
                %v194 = vld [vmem:[%s176 + $0x80] sm:%s169]
                %195 = vst [vmem:[%s177 + $0x40] sm:%s169] %v194
              $region49: #{part_agcn_tcn_forward.1} parent=43 // loop_footer
                %s175 = sadd.s32 1, %s171
              $region50: #{part_agcn_tcn_forward.1} parent=43 // loop_footer_branch
                %170 = sbr.rel target = $region46
              $region51: #{part_agcn_tcn_forward.1} parent=43 // loop_exit
                _
            $region44: #{part_agcn_tcn_forward.1} parent=35 // pred_fallthru
              _
          $region36: #{part_agcn_tcn_forward.1} parent=31 // pred_fallthru
            _
          %226 = vnop
        $region32: #{part_agcn_tcn_forward.1} parent=27 // pred_fallthru
          _
      $region28: #{part_agcn_tcn_forward.1} parent=5 // pred_fallthru
        _
      %p227 = scmp.le.s32.totalorder 1, %s10
      %p228 = scmp.lt.s32.totalorder %s10, 3
      %p229 = pnand %p227, %p228
      %p230 = pneg %p229
      // Predicated region
      $region67: #{part_agcn_tcn_forward.1} parent=5 // pred_check
        _
      $region68: #{part_agcn_tcn_forward.1} parent=5 // pred_check_branch
        %232 = sbr.rel (%p229) target = $region70
      $region69: #{part_agcn_tcn_forward.1} parent=5 // pred_region
        %s233 = ssub.s32 %s10, 1
        %s234 = sand.u32 %s23, 1
        %s235 = sand.u32 %s23, 1
        %s236 = smul.addr %s235, 72
        %s237 = scalar_lea.vmem [#allocation3], %s236
        // Predicated region
        $region71: #{part_agcn_tcn_forward.1} parent=69 // pred_check
          %p238 = pneg %p36
        $region72: #{part_agcn_tcn_forward.1} parent=69 // pred_check_branch
          %240 = sbr.rel (%p238) target = $region74
        $region73: #{part_agcn_tcn_forward.1} parent=69 // pred_region
          _
        $region74: #{part_agcn_tcn_forward.1} parent=69 // pred_fallthru
          _
        %s241 = sand.u32 %s23, 1
        %s242 = sand.u32 %s23, 1
        %s243 = smul.addr %s242, 72
        %s244 = scalar_lea.vmem [#allocation3], %s243
        %p245 = pneg %p36
        %p246 = pneg %p33
        %p247 = pneg %p57
        %p248 = pneg %p54
        %p249 = pneg %p78
        %p250 = pneg %p75
        %p251 = pneg %p99
        %p252 = pneg %p96
        %p253 = pneg %p125
        %p254 = pneg %p122
        %s255 = sand.u32 %s112, 1
        %s256 = sand.u32 %s112, 1
        %s257 = smul.addr %s256, 192
        %s258 = scalar_lea.vmem [#allocation4], %s257
        %v259 = vld [vmem:[%s1] sm:$0xff]
        %v260 = vld [vmem:[%s1 + $0x8] sm:$0xff]
        %v261 = vld [vmem:[%s1 + $0x10] sm:$0xff]
        %v262 = vld [vmem:[%s1 + $0x18] sm:$0xff]
        %v263 = vld [vmem:[%s1 + $0x20] sm:$0xff]
        %v264 = vld [vmem:[%s1 + $0x28] sm:$0xff]
        %v265 = vld [vmem:[%s1 + $0x30] sm:$0xff]
        %v266 = vld [vmem:[%s1 + $0x38] sm:$0xff]
        %v267 = vld [vmem:[%s1 + $0x40] sm:$0xff]
        %v268 = vld [vmem:[%s1 + $0x48] sm:$0xff]
        %v269 = vld [vmem:[%s1 + $0x50] sm:$0xff]
        %v270 = vld [vmem:[%s1 + $0x58] sm:$0xff]
        %v271 = vld [vmem:[%s1 + $0x60] sm:$0xff]
        %v272 = vld [vmem:[%s1 + $0x68] sm:$0xff]
        %v273 = vld [vmem:[%s1 + $0x70] sm:$0xff]
        %v274 = vld [vmem:[%s1 + $0x78] sm:$0xff]
        %v275 = vld [vmem:[%s1 + $0x80] sm:$0xff]
        %v276 = vld [vmem:[%s1 + $0x88] sm:$0xff]
        %v277 = vld [vmem:[%s1 + $0x90] sm:$0xff]
        %v278 = vld [vmem:[%s1 + $0x98] sm:$0xff]
        %v279 = vld [vmem:[%s1 + $0xa0] sm:$0xff]
        %v280 = vld [vmem:[%s1 + $0xa8] sm:$0xff]
        %v281 = vld [vmem:[%s1 + $0xb0] sm:$0xff]
        %v282 = vld [vmem:[%s1 + $0xb8] sm:$0xff]
        %v283 = vld [vmem:[%s1 + $0xc0] sm:$0xff]
        %v284 = vld [vmem:[%s1 + $0xc8] sm:$0xff]
        %v285 = vld [vmem:[%s1 + $0xd0] sm:$0xff]
        %v286 = vld [vmem:[%s1 + $0xd8] sm:$0xff]
        %v287 = vld [vmem:[%s1 + $0xe0] sm:$0xff]
        %v288 = vld [vmem:[%s1 + $0xe8] sm:$0xff]
        %v289 = vld [vmem:[%s1 + $0xf0] sm:$0xff]
        %v290 = vld [vmem:[%s1 + $0xf8] sm:$0xff]
        %v291 = vld [vmem:[%s1 + $0x100] sm:$0xff]
        %v292 = vld [vmem:[%s1 + $0x108] sm:$0xff]
        %v293 = vld [vmem:[%s1 + $0x110] sm:$0xff]
        %v294 = vld [vmem:[%s1 + $0x118] sm:$0xff]
        %v295 = vld [vmem:[%s1 + $0x120] sm:$0xff]
        %v296 = vld [vmem:[%s1 + $0x128] sm:$0xff]
        %v297 = vld [vmem:[%s1 + $0x130] sm:$0xff]
        %v298 = vld [vmem:[%s1 + $0x138] sm:$0xff]
        %v299 = vld [vmem:[%s1 + $0x140] sm:$0xff]
        %v300 = vld [vmem:[%s1 + $0x148] sm:$0xff]
        %v301 = vld [vmem:[%s1 + $0x150] sm:$0xff]
        %v302 = vld [vmem:[%s1 + $0x158] sm:$0xff]
        %v303 = vld [vmem:[%s1 + $0x160] sm:$0xff]
        %v304 = vld [vmem:[%s1 + $0x168] sm:$0xff]
        %v305 = vld [vmem:[%s1 + $0x170] sm:$0xff]
        %v306 = vld [vmem:[%s1 + $0x178] sm:$0xff]
        %v307 = vld [vmem:[%s1 + $0x180] sm:$0xff]
        %v308 = vld [vmem:[%s1 + $0x188] sm:$0xff]
        %v309 = vld [vmem:[%s1 + $0x190] sm:$0xff]
        %v310 = vld [vmem:[%s1 + $0x198] sm:$0xff]
        %v311 = vld [vmem:[%s1 + $0x1a0] sm:$0xff]
        %v312 = vld [vmem:[%s1 + $0x1a8] sm:$0xff]
        %v313 = vld [vmem:[%s1 + $0x1b0] sm:$0xff]
        %v314 = vld [vmem:[%s1 + $0x1b8] sm:$0xff]
        %v315 = vld [vmem:[%s1 + $0x1c0] sm:$0xff]
        %v316 = vld [vmem:[%s1 + $0x1c8] sm:$0xff]
        %v317 = vld [vmem:[%s1 + $0x1d0] sm:$0xff]
        %v318 = vld [vmem:[%s1 + $0x1d8] sm:$0xff]
        %v319 = vld [vmem:[%s1 + $0x1e0] sm:$0xff]
        %v320 = vld [vmem:[%s1 + $0x1e8] sm:$0xff]
        %v321 = vld [vmem:[%s1 + $0x1f0] sm:$0xff]
        %v322 = vld [vmem:[%s1 + $0x1f8] sm:$0xff]
        %v323 = vld [vmem:[%s1 + $0x200] sm:$0xff]
        %v324 = vld [vmem:[%s1 + $0x208] sm:$0xff]
        %v325 = vld [vmem:[%s1 + $0x210] sm:$0xff]
        %v326 = vld [vmem:[%s1 + $0x218] sm:$0xff]
        %v327 = vld [vmem:[%s1 + $0x220] sm:$0xff]
        %v328 = vld [vmem:[%s1 + $0x228] sm:$0xff]
        %v329 = vld [vmem:[%s1 + $0x230] sm:$0xff]
        %v330 = vld [vmem:[%s1 + $0x238] sm:$0xff]
        %v331 = vld [vmem:[%s1 + $0x240] sm:$0xff]
        %v332 = vld [vmem:[%s1 + $0x248] sm:$0xff]
        %v333 = vld [vmem:[%s1 + $0x250] sm:$0xff]
        %v334 = vld [vmem:[%s1 + $0x258] sm:$0xff]
        %v335 = vld [vmem:[%s1 + $0x260] sm:$0xff]
        %v336 = vld [vmem:[%s1 + $0x268] sm:$0xff]
        %v337 = vld [vmem:[%s1 + $0x270] sm:$0xff]
        %v338 = vld [vmem:[%s237] sm:$0xff]
        %v339 = vld [vmem:[%s237 + $0x8] sm:$0xff]
        %v340 = vld [vmem:[%s237 + $0x10] sm:$0xff]
        %v341 = vld [vmem:[%s237 + $0x18] sm:$0xff]
        %v342 = vld [vmem:[%s237 + $0x20] sm:$0xff]
        %v343 = vld [vmem:[%s237 + $0x28] sm:$0xff]
        %v344 = vld [vmem:[%s237 + $0x30] sm:$0xff]
        %v345 = vld [vmem:[%s237 + $0x38] sm:$0xff]
        %v346 = vld [vmem:[%s237 + $0x40] sm:$0x1]
        %vm347 = vcmask 531456
        %v349 = vsel %vm347, %v259, 0
        %v352 = vsel %vm347, %v260, 0
        %v355 = vsel %vm347, %v261, 0
        %v358 = vsel %vm347, %v262, 0
        %v361 = vsel %vm347, %v263, 0
        %v364 = vsel %vm347, %v264, 0
        %v367 = vsel %vm347, %v265, 0
        %v370 = vsel %vm347, %v266, 0
        %v373 = vsel %vm347, %v267, 0
        %v376 = vsel %vm347, %v268, 0
        %v379 = vsel %vm347, %v269, 0
        %v382 = vsel %vm347, %v270, 0
        %v385 = vsel %vm347, %v271, 0
        %v388 = vsel %vm347, %v272, 0
        %v391 = vsel %vm347, %v273, 0
        %v394 = vsel %vm347, %v274, 0
        %v397 = vsel %vm347, %v275, 0
        %v400 = vsel %vm347, %v276, 0
        %v403 = vsel %vm347, %v277, 0
        %v406 = vsel %vm347, %v278, 0
        %v409 = vsel %vm347, %v279, 0
        %v412 = vsel %vm347, %v280, 0
        %v415 = vsel %vm347, %v281, 0
        %v418 = vsel %vm347, %v282, 0
        %v421 = vsel %vm347, %v283, 0
        %v424 = vsel %vm347, %v284, 0
        %v427 = vsel %vm347, %v285, 0
        %v430 = vsel %vm347, %v286, 0
        %v433 = vsel %vm347, %v287, 0
        %v436 = vsel %vm347, %v288, 0
        %v439 = vsel %vm347, %v289, 0
        %v442 = vsel %vm347, %v290, 0
        %v445 = vsel %vm347, %v291, 0
        %v448 = vsel %vm347, %v292, 0
        %v451 = vsel %vm347, %v293, 0
        %v454 = vsel %vm347, %v294, 0
        %v457 = vsel %vm347, %v295, 0
        %v460 = vsel %vm347, %v296, 0
        %v463 = vsel %vm347, %v297, 0
        %v466 = vsel %vm347, %v298, 0
        %v469 = vsel %vm347, %v299, 0
        %v472 = vsel %vm347, %v300, 0
        %v475 = vsel %vm347, %v301, 0
        %v478 = vsel %vm347, %v302, 0
        %v481 = vsel %vm347, %v303, 0
        %v484 = vsel %vm347, %v304, 0
        %v487 = vsel %vm347, %v305, 0
        %v490 = vsel %vm347, %v306, 0
        %v493 = vsel %vm347, %v307, 0
        %v496 = vsel %vm347, %v308, 0
        %v499 = vsel %vm347, %v309, 0
        %v502 = vsel %vm347, %v310, 0
        %v505 = vsel %vm347, %v311, 0
        %v508 = vsel %vm347, %v312, 0
        %v511 = vsel %vm347, %v313, 0
        %v514 = vsel %vm347, %v314, 0
        %v517 = vsel %vm347, %v315, 0
        %v520 = vsel %vm347, %v316, 0
        %v523 = vsel %vm347, %v317, 0
        %v526 = vsel %vm347, %v318, 0
        %v529 = vsel %vm347, %v319, 0
        %v532 = vsel %vm347, %v320, 0
        %v535 = vsel %vm347, %v321, 0
        %v538 = vsel %vm347, %v322, 0
        %v541 = vsel %vm347, %v323, 0
        %v544 = vsel %vm347, %v324, 0
        %v547 = vsel %vm347, %v325, 0
        %v550 = vsel %vm347, %v326, 0
        %v553 = vsel %vm347, %v327, 0
        %v556 = vsel %vm347, %v328, 0
        %v559 = vsel %vm347, %v329, 0
        %v562 = vsel %vm347, %v330, 0
        %v565 = vsel %vm347, %v331, 0
        %v568 = vsel %vm347, %v332, 0
        %v571 = vsel %vm347, %v333, 0
        %v574 = vsel %vm347, %v334, 0
        %v577 = vsel %vm347, %v335, 0
        %v580 = vsel %vm347, %v336, 0
        %v583 = vsel %vm347, %v337, 0
        %vm585 = vcmask 1040384
        %v587 = vsel %vm585, %v346, 0
        %589 = vmatpush.msra.mxu0 0.0
        %590 = vmatpush.msra.mxu0 0.0
        %591 = vmatpush.msra.mxu0 0.0
        %592 = vmatpush.msra.mxu0 0.0
        %593 = vmatpush.msra.mxu0 0.0
        %594 = vmatpush.msra.mxu0 0.0
        %595 = vmatpush.msra.mxu0 0.0
        %596 = vmatpush.msra.mxu0 %v587
        %597 = vmatpush.msra.mxu0 %v345
        %598 = vmatpush.msra.mxu0 %v344
        %599 = vmatpush.msra.mxu0 %v343
        %600 = vmatpush.msra.mxu0 %v342
        %601 = vmatpush.msra.mxu0 %v341
        %602 = vmatpush.msra.mxu0 %v340
        %603 = vmatpush.msra.mxu0 %v339
        %604 = vmatpush.msra.mxu0 %v338
        %605 = vmatmul.f32.gmra.mxu0 %v349
        %v606 = vpop.f32.mrf.mxu0
        %v607 = vadd.f32 0.0, %v606
        %608 = vmatmul.f32.gmra.mxu0 %v352
        %v609 = vpop.f32.mrf.mxu0
        %v610 = vadd.f32 0.0, %v609
        %611 = vmatmul.f32.gmra.mxu0 %v355
        %v612 = vpop.f32.mrf.mxu0
        %v613 = vadd.f32 0.0, %v612
        %614 = vmatmul.f32.gmra.mxu0 %v358
        %v615 = vpop.f32.mrf.mxu0
        %v616 = vadd.f32 0.0, %v615
        %617 = vmatmul.f32.gmra.mxu0 %v361
        %v618 = vpop.f32.mrf.mxu0
        %v619 = vadd.f32 0.0, %v618
        %620 = vmatmul.f32.gmra.mxu0 %v364
        %v621 = vpop.f32.mrf.mxu0
        %v622 = vadd.f32 0.0, %v621
        %623 = vmatmul.f32.gmra.mxu0 %v367
        %v624 = vpop.f32.mrf.mxu0
        %v625 = vadd.f32 0.0, %v624
        %626 = vmatmul.f32.gmra.mxu0 %v370
        %v627 = vpop.f32.mrf.mxu0
        %v628 = vadd.f32 0.0, %v627
        %629 = vmatmul.f32.gmra.mxu0 %v373
        %v630 = vpop.f32.mrf.mxu0
        %v631 = vadd.f32 0.0, %v630
        %632 = vmatmul.f32.gmra.mxu0 %v376
        %v633 = vpop.f32.mrf.mxu0
        %v634 = vadd.f32 0.0, %v633
        %635 = vmatmul.f32.gmra.mxu0 %v379
        %v636 = vpop.f32.mrf.mxu0
        %v637 = vadd.f32 0.0, %v636
        %638 = vmatmul.f32.gmra.mxu0 %v382
        %v639 = vpop.f32.mrf.mxu0
        %v640 = vadd.f32 0.0, %v639
        %641 = vmatmul.f32.gmra.mxu0 %v385
        %v642 = vpop.f32.mrf.mxu0
        %v643 = vadd.f32 0.0, %v642
        %644 = vmatmul.f32.gmra.mxu0 %v388
        %v645 = vpop.f32.mrf.mxu0
        %v646 = vadd.f32 0.0, %v645
        %647 = vmatmul.f32.gmra.mxu0 %v391
        %v648 = vpop.f32.mrf.mxu0
        %v649 = vadd.f32 0.0, %v648
        %650 = vmatmul.f32.gmra.mxu0 %v394
        %v651 = vpop.f32.mrf.mxu0
        %v652 = vadd.f32 0.0, %v651
        %653 = vmatmul.f32.gmra.mxu0 %v397
        %v654 = vpop.f32.mrf.mxu0
        %v655 = vadd.f32 0.0, %v654
        %656 = vmatmul.f32.gmra.mxu0 %v400
        %v657 = vpop.f32.mrf.mxu0
        %v658 = vadd.f32 0.0, %v657
        %659 = vmatmul.f32.gmra.mxu0 %v403
        %v660 = vpop.f32.mrf.mxu0
        %v661 = vadd.f32 0.0, %v660
        %662 = vmatmul.f32.gmra.mxu0 %v406
        %v663 = vpop.f32.mrf.mxu0
        %v664 = vadd.f32 0.0, %v663
        %665 = vmatmul.f32.gmra.mxu0 %v409
        %v666 = vpop.f32.mrf.mxu0
        %v667 = vadd.f32 0.0, %v666
        %668 = vmatmul.f32.gmra.mxu0 %v412
        %v669 = vpop.f32.mrf.mxu0
        %v670 = vadd.f32 0.0, %v669
        %671 = vmatmul.f32.gmra.mxu0 %v415
        %v672 = vpop.f32.mrf.mxu0
        %v673 = vadd.f32 0.0, %v672
        %674 = vmatmul.f32.gmra.mxu0 %v418
        %v675 = vpop.f32.mrf.mxu0
        %v676 = vadd.f32 0.0, %v675
        %677 = vmatmul.f32.gmra.mxu0 %v421
        %v678 = vpop.f32.mrf.mxu0
        %v679 = vadd.f32 0.0, %v678
        %680 = vmatmul.f32.gmra.mxu0 %v424
        %v681 = vpop.f32.mrf.mxu0
        %v682 = vadd.f32 0.0, %v681
        %683 = vmatmul.f32.gmra.mxu0 %v427
        %v684 = vpop.f32.mrf.mxu0
        %v685 = vadd.f32 0.0, %v684
        %686 = vmatmul.f32.gmra.mxu0 %v430
        %v687 = vpop.f32.mrf.mxu0
        %v688 = vadd.f32 0.0, %v687
        %689 = vmatmul.f32.gmra.mxu0 %v433
        %v690 = vpop.f32.mrf.mxu0
        %v691 = vadd.f32 0.0, %v690
        %692 = vmatmul.f32.gmra.mxu0 %v436
        %v693 = vpop.f32.mrf.mxu0
        %v694 = vadd.f32 0.0, %v693
        %695 = vmatmul.f32.gmra.mxu0 %v439
        %v696 = vpop.f32.mrf.mxu0
        %v697 = vadd.f32 0.0, %v696
        %698 = vmatmul.f32.gmra.mxu0 %v442
        %v699 = vpop.f32.mrf.mxu0
        %v700 = vadd.f32 0.0, %v699
        %701 = vmatmul.f32.gmra.mxu0 %v445
        %v702 = vpop.f32.mrf.mxu0
        %v703 = vadd.f32 0.0, %v702
        %704 = vmatmul.f32.gmra.mxu0 %v448
        %v705 = vpop.f32.mrf.mxu0
        %v706 = vadd.f32 0.0, %v705
        %707 = vmatmul.f32.gmra.mxu0 %v451
        %v708 = vpop.f32.mrf.mxu0
        %v709 = vadd.f32 0.0, %v708
        %710 = vmatmul.f32.gmra.mxu0 %v454
        %v711 = vpop.f32.mrf.mxu0
        %v712 = vadd.f32 0.0, %v711
        %713 = vmatmul.f32.gmra.mxu0 %v457
        %v714 = vpop.f32.mrf.mxu0
        %v715 = vadd.f32 0.0, %v714
        %716 = vmatmul.f32.gmra.mxu0 %v460
        %v717 = vpop.f32.mrf.mxu0
        %v718 = vadd.f32 0.0, %v717
        %719 = vmatmul.f32.gmra.mxu0 %v463
        %v720 = vpop.f32.mrf.mxu0
        %v721 = vadd.f32 0.0, %v720
        %722 = vmatmul.f32.gmra.mxu0 %v466
        %v723 = vpop.f32.mrf.mxu0
        %v724 = vadd.f32 0.0, %v723
        %725 = vmatmul.f32.gmra.mxu0 %v469
        %v726 = vpop.f32.mrf.mxu0
        %v727 = vadd.f32 0.0, %v726
        %728 = vmatmul.f32.gmra.mxu0 %v472
        %v729 = vpop.f32.mrf.mxu0
        %v730 = vadd.f32 0.0, %v729
        %731 = vmatmul.f32.gmra.mxu0 %v475
        %v732 = vpop.f32.mrf.mxu0
        %v733 = vadd.f32 0.0, %v732
        %734 = vmatmul.f32.gmra.mxu0 %v478
        %v735 = vpop.f32.mrf.mxu0
        %v736 = vadd.f32 0.0, %v735
        %737 = vmatmul.f32.gmra.mxu0 %v481
        %v738 = vpop.f32.mrf.mxu0
        %v739 = vadd.f32 0.0, %v738
        %740 = vmatmul.f32.gmra.mxu0 %v484
        %v741 = vpop.f32.mrf.mxu0
        %v742 = vadd.f32 0.0, %v741
        %743 = vmatmul.f32.gmra.mxu0 %v487
        %v744 = vpop.f32.mrf.mxu0
        %v745 = vadd.f32 0.0, %v744
        %746 = vmatmul.f32.gmra.mxu0 %v490
        %v747 = vpop.f32.mrf.mxu0
        %v748 = vadd.f32 0.0, %v747
        %749 = vmatmul.f32.gmra.mxu0 %v493
        %v750 = vpop.f32.mrf.mxu0
        %v751 = vadd.f32 0.0, %v750
        %752 = vmatmul.f32.gmra.mxu0 %v496
        %v753 = vpop.f32.mrf.mxu0
        %v754 = vadd.f32 0.0, %v753
        %755 = vmatmul.f32.gmra.mxu0 %v499
        %v756 = vpop.f32.mrf.mxu0
        %v757 = vadd.f32 0.0, %v756
        %758 = vmatmul.f32.gmra.mxu0 %v502
        %v759 = vpop.f32.mrf.mxu0
        %v760 = vadd.f32 0.0, %v759
        %761 = vmatmul.f32.gmra.mxu0 %v505
        %v762 = vpop.f32.mrf.mxu0
        %v763 = vadd.f32 0.0, %v762
        %764 = vmatmul.f32.gmra.mxu0 %v508
        %v765 = vpop.f32.mrf.mxu0
        %v766 = vadd.f32 0.0, %v765
        %767 = vmatmul.f32.gmra.mxu0 %v511
        %v768 = vpop.f32.mrf.mxu0
        %v769 = vadd.f32 0.0, %v768
        %770 = vmatmul.f32.gmra.mxu0 %v514
        %v771 = vpop.f32.mrf.mxu0
        %v772 = vadd.f32 0.0, %v771
        %773 = vmatmul.f32.gmra.mxu0 %v517
        %v774 = vpop.f32.mrf.mxu0
        %v775 = vadd.f32 0.0, %v774
        %776 = vmatmul.f32.gmra.mxu0 %v520
        %v777 = vpop.f32.mrf.mxu0
        %v778 = vadd.f32 0.0, %v777
        %779 = vmatmul.f32.gmra.mxu0 %v523
        %v780 = vpop.f32.mrf.mxu0
        %v781 = vadd.f32 0.0, %v780
        %782 = vmatmul.f32.gmra.mxu0 %v526
        %v783 = vpop.f32.mrf.mxu0
        %v784 = vadd.f32 0.0, %v783
        %785 = vmatmul.f32.gmra.mxu0 %v529
        %v786 = vpop.f32.mrf.mxu0
        %v787 = vadd.f32 0.0, %v786
        %788 = vmatmul.f32.gmra.mxu0 %v532
        %v789 = vpop.f32.mrf.mxu0
        %v790 = vadd.f32 0.0, %v789
        %791 = vmatmul.f32.gmra.mxu0 %v535
        %v792 = vpop.f32.mrf.mxu0
        %v793 = vadd.f32 0.0, %v792
        %794 = vmatmul.f32.gmra.mxu0 %v538
        %v795 = vpop.f32.mrf.mxu0
        %v796 = vadd.f32 0.0, %v795
        %797 = vmatmul.f32.gmra.mxu0 %v541
        %v798 = vpop.f32.mrf.mxu0
        %v799 = vadd.f32 0.0, %v798
        %800 = vmatmul.f32.gmra.mxu0 %v544
        %v801 = vpop.f32.mrf.mxu0
        %v802 = vadd.f32 0.0, %v801
        %803 = vmatmul.f32.gmra.mxu0 %v547
        %v804 = vpop.f32.mrf.mxu0
        %v805 = vadd.f32 0.0, %v804
        %806 = vmatmul.f32.gmra.mxu0 %v550
        %v807 = vpop.f32.mrf.mxu0
        %v808 = vadd.f32 0.0, %v807
        %809 = vmatmul.f32.gmra.mxu0 %v553
        %v810 = vpop.f32.mrf.mxu0
        %v811 = vadd.f32 0.0, %v810
        %812 = vmatmul.f32.gmra.mxu0 %v556
        %v813 = vpop.f32.mrf.mxu0
        %v814 = vadd.f32 0.0, %v813
        %815 = vmatmul.f32.gmra.mxu0 %v559
        %v816 = vpop.f32.mrf.mxu0
        %v817 = vadd.f32 0.0, %v816
        %818 = vmatmul.f32.gmra.mxu0 %v562
        %v819 = vpop.f32.mrf.mxu0
        %v820 = vadd.f32 0.0, %v819
        %821 = vmatmul.f32.gmra.mxu0 %v565
        %v822 = vpop.f32.mrf.mxu0
        %v823 = vadd.f32 0.0, %v822
        %824 = vmatmul.f32.gmra.mxu0 %v568
        %v825 = vpop.f32.mrf.mxu0
        %v826 = vadd.f32 0.0, %v825
        %827 = vmatmul.f32.gmra.mxu0 %v571
        %v828 = vpop.f32.mrf.mxu0
        %v829 = vadd.f32 0.0, %v828
        %830 = vmatmul.f32.gmra.mxu0 %v574
        %v831 = vpop.f32.mrf.mxu0
        %v832 = vadd.f32 0.0, %v831
        %833 = vmatmul.f32.gmra.mxu0 %v577
        %v834 = vpop.f32.mrf.mxu0
        %v835 = vadd.f32 0.0, %v834
        %836 = vmatmul.f32.gmra.mxu0 %v580
        %v837 = vpop.f32.mrf.mxu0
        %v838 = vadd.f32 0.0, %v837
        %839 = vmatmul.f32.gmra.mxu0 %v583
        %v840 = vpop.f32.mrf.mxu0
        %v841 = vadd.f32 0.0, %v840
        %842 = vdwg.mxu0
        %843 = vst [vmem:[#allocation2] sm:$0xff] %v607
        %844 = vst [vmem:[#allocation2 + $0x8] sm:$0xff] %v610
        %845 = vst [vmem:[#allocation2 + $0x10] sm:$0xff] %v613
        %846 = vst [vmem:[#allocation2 + $0x18] sm:$0xff] %v616
        %847 = vst [vmem:[#allocation2 + $0x20] sm:$0xff] %v619
        %848 = vst [vmem:[#allocation2 + $0x28] sm:$0xff] %v622
        %849 = vst [vmem:[#allocation2 + $0x30] sm:$0xff] %v625
        %850 = vst [vmem:[#allocation2 + $0x38] sm:$0xff] %v628
        %851 = vst [vmem:[#allocation2 + $0x40] sm:$0xff] %v631
        %852 = vst [vmem:[#allocation2 + $0x48] sm:$0xff] %v634
        %853 = vst [vmem:[#allocation2 + $0x50] sm:$0xff] %v637
        %854 = vst [vmem:[#allocation2 + $0x58] sm:$0xff] %v640
        %855 = vst [vmem:[#allocation2 + $0x60] sm:$0xff] %v643
        %856 = vst [vmem:[#allocation2 + $0x68] sm:$0xff] %v646
        %857 = vst [vmem:[#allocation2 + $0x70] sm:$0xff] %v649
        %858 = vst [vmem:[#allocation2 + $0x78] sm:$0xff] %v652
        %859 = vst [vmem:[#allocation2 + $0x80] sm:$0xff] %v655
        %860 = vst [vmem:[#allocation2 + $0x88] sm:$0xff] %v658
        %861 = vst [vmem:[#allocation2 + $0x90] sm:$0xff] %v661
        %862 = vst [vmem:[#allocation2 + $0x98] sm:$0xff] %v664
        %863 = vst [vmem:[#allocation2 + $0xa0] sm:$0xff] %v667
        %864 = vst [vmem:[#allocation2 + $0xa8] sm:$0xff] %v670
        %865 = vst [vmem:[#allocation2 + $0xb0] sm:$0xff] %v673
        %866 = vst [vmem:[#allocation2 + $0xb8] sm:$0xff] %v676
        %867 = vst [vmem:[#allocation2 + $0xc0] sm:$0xff] %v679
        %868 = vst [vmem:[#allocation2 + $0xc8] sm:$0xff] %v682
        %869 = vst [vmem:[#allocation2 + $0xd0] sm:$0xff] %v685
        %870 = vst [vmem:[#allocation2 + $0xd8] sm:$0xff] %v688
        %871 = vst [vmem:[#allocation2 + $0xe0] sm:$0xff] %v691
        %872 = vst [vmem:[#allocation2 + $0xe8] sm:$0xff] %v694
        %873 = vst [vmem:[#allocation2 + $0xf0] sm:$0xff] %v697
        %874 = vst [vmem:[#allocation2 + $0xf8] sm:$0xff] %v700
        %875 = vst [vmem:[#allocation2 + $0x100] sm:$0xff] %v703
        %876 = vst [vmem:[#allocation2 + $0x108] sm:$0xff] %v706
        %877 = vst [vmem:[#allocation2 + $0x110] sm:$0xff] %v709
        %878 = vst [vmem:[#allocation2 + $0x118] sm:$0xff] %v712
        %879 = vst [vmem:[#allocation2 + $0x120] sm:$0xff] %v715
        %880 = vst [vmem:[#allocation2 + $0x128] sm:$0xff] %v718
        %881 = vst [vmem:[#allocation2 + $0x130] sm:$0xff] %v721
        %882 = vst [vmem:[#allocation2 + $0x138] sm:$0xff] %v724
        %883 = vst [vmem:[#allocation2 + $0x140] sm:$0xff] %v727
        %884 = vst [vmem:[#allocation2 + $0x148] sm:$0xff] %v730
        %885 = vst [vmem:[#allocation2 + $0x150] sm:$0xff] %v733
        %886 = vst [vmem:[#allocation2 + $0x158] sm:$0xff] %v736
        %887 = vst [vmem:[#allocation2 + $0x160] sm:$0xff] %v739
        %888 = vst [vmem:[#allocation2 + $0x168] sm:$0xff] %v742
        %889 = vst [vmem:[#allocation2 + $0x170] sm:$0xff] %v745
        %890 = vst [vmem:[#allocation2 + $0x178] sm:$0xff] %v748
        %891 = vst [vmem:[#allocation2 + $0x180] sm:$0xff] %v751
        %892 = vst [vmem:[#allocation2 + $0x188] sm:$0xff] %v754
        %893 = vst [vmem:[#allocation2 + $0x190] sm:$0xff] %v757
        %894 = vst [vmem:[#allocation2 + $0x198] sm:$0xff] %v760
        %895 = vst [vmem:[#allocation2 + $0x1a0] sm:$0xff] %v763
        %896 = vst [vmem:[#allocation2 + $0x1a8] sm:$0xff] %v766
        %897 = vst [vmem:[#allocation2 + $0x1b0] sm:$0xff] %v769
        %898 = vst [vmem:[#allocation2 + $0x1b8] sm:$0xff] %v772
        %899 = vst [vmem:[#allocation2 + $0x1c0] sm:$0xff] %v775
        %900 = vst [vmem:[#allocation2 + $0x1c8] sm:$0xff] %v778
        %901 = vst [vmem:[#allocation2 + $0x1d0] sm:$0xff] %v781
        %902 = vst [vmem:[#allocation2 + $0x1d8] sm:$0xff] %v784
        %903 = vst [vmem:[#allocation2 + $0x1e0] sm:$0xff] %v787
        %904 = vst [vmem:[#allocation2 + $0x1e8] sm:$0xff] %v790
        %905 = vst [vmem:[#allocation2 + $0x1f0] sm:$0xff] %v793
        %906 = vst [vmem:[#allocation2 + $0x1f8] sm:$0xff] %v796
        %907 = vst [vmem:[#allocation2 + $0x200] sm:$0xff] %v799
        %908 = vst [vmem:[#allocation2 + $0x208] sm:$0xff] %v802
        %909 = vst [vmem:[#allocation2 + $0x210] sm:$0xff] %v805
        %910 = vst [vmem:[#allocation2 + $0x218] sm:$0xff] %v808
        %911 = vst [vmem:[#allocation2 + $0x220] sm:$0xff] %v811
        %912 = vst [vmem:[#allocation2 + $0x228] sm:$0xff] %v814
        %913 = vst [vmem:[#allocation2 + $0x230] sm:$0xff] %v817
        %914 = vst [vmem:[#allocation2 + $0x238] sm:$0xff] %v820
        %915 = vst [vmem:[#allocation2 + $0x240] sm:$0xff] %v823
        %916 = vst [vmem:[#allocation2 + $0x248] sm:$0xff] %v826
        %917 = vst [vmem:[#allocation2 + $0x250] sm:$0xff] %v829
        %918 = vst [vmem:[#allocation2 + $0x258] sm:$0xff] %v832
        %919 = vst [vmem:[#allocation2 + $0x260] sm:$0xff] %v835
        %920 = vst [vmem:[#allocation2 + $0x268] sm:$0xff] %v838
        %921 = vst [vmem:[#allocation2 + $0x270] sm:$0xff] %v841
        %v922 = vld [vmem:[%s2] sm:$0xff]
        %v923 = vld [vmem:[%s2 + $0x8] sm:$0xff]
        %v924 = vld [vmem:[%s2 + $0x10] sm:$0xff]
        %v925 = vld [vmem:[%s2 + $0x18] sm:$0xff]
        %v926 = vld [vmem:[%s2 + $0x20] sm:$0xff]
        %v927 = vld [vmem:[%s2 + $0x28] sm:$0xff]
        %v928 = vld [vmem:[%s2 + $0x30] sm:$0xff]
        %v929 = vld [vmem:[%s2 + $0x38] sm:$0xff]
        %v930 = vld [vmem:[%s2 + $0x40] sm:$0xff]
        %v931 = vld [vmem:[%s2 + $0x48] sm:$0xff]
        %v932 = vld [vmem:[%s2 + $0x50] sm:$0xff]
        %v933 = vld [vmem:[%s2 + $0x58] sm:$0xff]
        %v934 = vld [vmem:[%s2 + $0x60] sm:$0xff]
        %v935 = vld [vmem:[%s2 + $0x68] sm:$0xff]
        %v936 = vld [vmem:[%s2 + $0x70] sm:$0xff]
        %v937 = vld [vmem:[%s2 + $0x78] sm:$0xff]
        %s938 = scalar_lea.vmem %s2, 128
        %v939 = vld [vmem:[%s938] sm:$0xff]
        %v940 = vld [vmem:[%s938 + $0x8] sm:$0xff]
        %v941 = vld [vmem:[%s938 + $0x10] sm:$0xff]
        %v942 = vld [vmem:[%s938 + $0x18] sm:$0xff]
        %v943 = vld [vmem:[%s938 + $0x20] sm:$0xff]
        %v944 = vld [vmem:[%s938 + $0x28] sm:$0xff]
        %v945 = vld [vmem:[%s938 + $0x30] sm:$0xff]
        %v946 = vld [vmem:[%s938 + $0x38] sm:$0xff]
        %v947 = vld [vmem:[%s938 + $0x40] sm:$0xff]
        %v948 = vld [vmem:[%s938 + $0x48] sm:$0xff]
        %v949 = vld [vmem:[%s938 + $0x50] sm:$0xff]
        %v950 = vld [vmem:[%s938 + $0x58] sm:$0xff]
        %v951 = vld [vmem:[%s938 + $0x60] sm:$0xff]
        %v952 = vld [vmem:[%s938 + $0x68] sm:$0xff]
        %v953 = vld [vmem:[%s938 + $0x70] sm:$0xff]
        %v954 = vld [vmem:[%s938 + $0x78] sm:$0xff]
        %v955 = vld [vmem:[#allocation2 + $0x120] sm:$0xff]
        %v956 = vld [vmem:[#allocation2 + $0x128] sm:$0xff]
        %v957 = vld [vmem:[#allocation2 + $0x130] sm:$0xff]
        %v958 = vld [vmem:[#allocation2 + $0x138] sm:$0xff]
        %v959 = vld [vmem:[#allocation2 + $0x140] sm:$0xff]
        %v960 = vld [vmem:[#allocation2 + $0x148] sm:$0xff]
        %v961 = vld [vmem:[#allocation2 + $0x150] sm:$0xff]
        %v962 = vld [vmem:[#allocation2 + $0x158] sm:$0xff]
        %v963 = vld [vmem:[#allocation2 + $0x160] sm:$0xff]
        %v964 = vld [vmem:[#allocation2 + $0x168] sm:$0xff]
        %v965 = vld [vmem:[#allocation2 + $0x170] sm:$0xff]
        %v966 = vld [vmem:[#allocation2 + $0x178] sm:$0xff]
        %v967 = vld [vmem:[#allocation2 + $0x218] sm:$0xff]
        %v968 = vld [vmem:[#allocation2 + $0x220] sm:$0xff]
        %v969 = vld [vmem:[#allocation2 + $0x248] sm:$0xff]
        %v970 = vld [vmem:[#allocation2 + $0x250] sm:$0xff]
        %971 = vxpose.xlu0.b32.start [1/16] %v967, 128
        %972 = vxpose.xlu0.b32.cont [2/16] %v968, 128
        %973 = vxpose.xlu0.b32.cont [3/16] 0.0, 128
        %974 = vxpose.xlu0.b32.cont [4/16] 0.0, 128
        %975 = vxpose.xlu0.b32.cont [5/16] 0.0, 128
        %976 = vxpose.xlu0.b32.cont [6/16] 0.0, 128
        %977 = vxpose.xlu0.b32.cont [7/16] 0.0, 128
        %978 = vxpose.xlu0.b32.cont [8/16] 0.0, 128
        %979 = vxpose.xlu0.b32.cont [9/16] 0.0, 128
        %980 = vxpose.xlu0.b32.cont [10/16] 0.0, 128
        %981 = vxpose.xlu0.b32.cont [11/16] 0.0, 128
        %982 = vxpose.xlu0.b32.cont [12/16] 0.0, 128
        %983 = vxpose.xlu0.b32.cont [13/16] 0.0, 128
        %984 = vxpose.xlu0.b32.cont [14/16] 0.0, 128
        %985 = vxpose.xlu0.b32.cont [15/16] 0.0, 128
        %986 = vxpose.xlu0.b32.end [16/16] 0.0, 128
        %v987 = vpop.trf.xlu0
        %v988 = vpop.trf.xlu0
        %v989 = vpop.trf.xlu0
        %v990 = vpop.trf.xlu0
        %v991 = vpop.trf.xlu0
        %v992 = vpop.trf.xlu0
        %v993 = vpop.trf.xlu0
        %v994 = vpop.trf.xlu0
        %v995 = vpop.trf.xlu0
        %v996 = vpop.trf.xlu0
        %v997 = vpop.trf.xlu0
        %v998 = vpop.trf.xlu0
        %v999 = vpop.trf.xlu0
        %v1000 = vpop.trf.xlu0
        %v1001 = vpop.trf.xlu0
        %v1002 = vpop.trf.xlu0
        %vm1003 = vcmask 130048
        %v1005 = vsel %vm1003, %v987, 0
        %v1008 = vsel %vm1003, %v988, 0
        %v1011 = vsel %vm1003, %v989, 0
        %v1014 = vsel %vm1003, %v990, 0
        %v1017 = vsel %vm1003, %v991, 0
        %v1020 = vsel %vm1003, %v992, 0
        %v1023 = vsel %vm1003, %v993, 0
        %v1026 = vsel %vm1003, %v994, 0
        %v1029 = vsel %vm1003, %v995, 0
        %v1032 = vsel %vm1003, %v996, 0
        %v1035 = vsel %vm1003, %v997, 0
        %v1038 = vsel %vm1003, %v998, 0
        %v1041 = vsel %vm1003, %v999, 0
        %v1044 = vsel %vm1003, %v1000, 0
        %v1047 = vsel %vm1003, %v1001, 0
        %v1050 = vsel %vm1003, %v1002, 0
        %1052 = vmatpush.msra.mxu0 0.0
        %1053 = vmatpush.msra.mxu0 0.0
        %1054 = vmatpush.msra.mxu0 0.0
        %1055 = vmatpush.msra.mxu0 0.0
        %1056 = vmatpush.msra.mxu0 0.0
        %1057 = vmatpush.msra.mxu0 0.0
        %1058 = vmatpush.msra.mxu0 0.0
        %1059 = vmatpush.msra.mxu0 0.0
        %1060 = vmatpush.msra.mxu0 0.0
        %1061 = vmatpush.msra.mxu0 0.0
        %1062 = vmatpush.msra.mxu0 0.0
        %1063 = vmatpush.msra.mxu0 0.0
        %1064 = vmatpush.msra.mxu0 0.0
        %1065 = vmatpush.msra.mxu0 0.0
        %1066 = vmatpush.msra.mxu0 %v970
        %1067 = vmatpush.msra.mxu0 %v969
        %1068 = vmatmul.f32.gmra.mxu0 %v1005
        %v1069 = vpop.f32.mrf.mxu0
        %v1070 = vadd.f32 %v922, %v1069
        %1071 = vmatmul.f32.gmra.mxu0 %v1008
        %v1072 = vpop.f32.mrf.mxu0
        %v1073 = vadd.f32 %v923, %v1072
        %1074 = vmatmul.f32.gmra.mxu0 %v1011
        %v1075 = vpop.f32.mrf.mxu0
        %v1076 = vadd.f32 %v924, %v1075
        %1077 = vmatmul.f32.gmra.mxu0 %v1014
        %v1078 = vpop.f32.mrf.mxu0
        %v1079 = vadd.f32 %v925, %v1078
        %1080 = vmatmul.f32.gmra.mxu0 %v1017
        %v1081 = vpop.f32.mrf.mxu0
        %v1082 = vadd.f32 %v926, %v1081
        %1083 = vmatmul.f32.gmra.mxu0 %v1020
        %v1084 = vpop.f32.mrf.mxu0
        %v1085 = vadd.f32 %v927, %v1084
        %1086 = vmatmul.f32.gmra.mxu0 %v1023
        %v1087 = vpop.f32.mrf.mxu0
        %v1088 = vadd.f32 %v928, %v1087
        %1089 = vmatmul.f32.gmra.mxu0 %v1026
        %v1090 = vpop.f32.mrf.mxu0
        %v1091 = vadd.f32 %v929, %v1090
        %1092 = vmatmul.f32.gmra.mxu0 %v1029
        %v1093 = vpop.f32.mrf.mxu0
        %v1094 = vadd.f32 %v930, %v1093
        %1095 = vmatmul.f32.gmra.mxu0 %v1032
        %v1096 = vpop.f32.mrf.mxu0
        %v1097 = vadd.f32 %v931, %v1096
        %1098 = vmatmul.f32.gmra.mxu0 %v1035
        %v1099 = vpop.f32.mrf.mxu0
        %v1100 = vadd.f32 %v932, %v1099
        %1101 = vmatmul.f32.gmra.mxu0 %v1038
        %v1102 = vpop.f32.mrf.mxu0
        %v1103 = vadd.f32 %v933, %v1102
        %1104 = vmatmul.f32.gmra.mxu0 %v1041
        %v1105 = vpop.f32.mrf.mxu0
        %v1106 = vadd.f32 %v934, %v1105
        %1107 = vmatmul.f32.gmra.mxu0 %v1044
        %v1108 = vpop.f32.mrf.mxu0
        %v1109 = vadd.f32 %v935, %v1108
        %1110 = vmatmul.f32.gmra.mxu0 %v1047
        %v1111 = vpop.f32.mrf.mxu0
        %v1112 = vadd.f32 %v936, %v1111
        %1113 = vmatmul.f32.gmra.mxu0 %v1050
        %v1114 = vpop.f32.mrf.mxu0
        %v1115 = vadd.f32 %v937, %v1114
        %1116 = vdwg.mxu0
        %v1117 = vmax.f32 %v1070, %v1082
        %v1118 = vmax.f32 %v1073, %v1085
        %v1119 = vmax.f32 %v1076, %v1088
        %v1120 = vmax.f32 %v1079, %v1091
        %v1121 = vmax.f32 %v1117, %v1094
        %v1122 = vmax.f32 %v1118, %v1097
        %v1123 = vmax.f32 %v1119, %v1100
        %v1124 = vmax.f32 %v1120, %v1103
        %v1125 = vmax.f32 %v1121, %v1106
        %v1126 = vmax.f32 %v1122, %v1109
        %v1127 = vmax.f32 %v1123, %v1112
        %v1128 = vmax.f32 %v1124, %v1115
        %v1129 = vmax.f32 %v1125, %v1126
        %v1130 = vmax.f32 %v1127, %v1128
        %v1131 = vmax.f32 %v1129, %v1130
        %v1132 = vrot.slane %v1131, 4
        %v1133 = vmax.f32 %v1131, %v1132
        %v1134 = vrot.slane %v1133, 2
        %v1135 = vmax.f32 %v1133, %v1134
        %v1136 = vrot.slane %v1135, 1
        %v1137 = vmax.f32 %v1135, %v1136
        %v1138 = vsub.f32 %v1070, %v1137
        %v1139 = vsub.f32 %v1073, %v1137
        %v1140 = vsub.f32 %v1076, %v1137
        %v1141 = vsub.f32 %v1079, %v1137
        %v1142 = vsub.f32 %v1082, %v1137
        %v1143 = vsub.f32 %v1085, %v1137
        %v1144 = vsub.f32 %v1088, %v1137
        %v1145 = vsub.f32 %v1091, %v1137
        %v1146 = vsub.f32 %v1094, %v1137
        %v1147 = vsub.f32 %v1097, %v1137
        %v1148 = vsub.f32 %v1100, %v1137
        %v1149 = vsub.f32 %v1103, %v1137
        %v1150 = vsub.f32 %v1106, %v1137
        %v1151 = vsub.f32 %v1109, %v1137
        %v1152 = vsub.f32 %v1112, %v1137
        %v1153 = vsub.f32 %v1115, %v1137
        %v1154 = vmul.f32 %v1138, 1.442695
        %v1155 = vpow.pop %v1154
        %v1156 = vmul.f32 %v1139, 1.442695
        %v1157 = vpow.pop %v1156
        %v1158 = vmul.f32 %v1140, 1.442695
        %v1159 = vpow.pop %v1158
        %v1160 = vmul.f32 %v1141, 1.442695
        %v1161 = vpow.pop %v1160
        %v1162 = vmul.f32 %v1142, 1.442695
        %v1163 = vpow.pop %v1162
        %v1164 = vmul.f32 %v1143, 1.442695
        %v1165 = vpow.pop %v1164
        %v1166 = vmul.f32 %v1144, 1.442695
        %v1167 = vpow.pop %v1166
        %v1168 = vmul.f32 %v1145, 1.442695
        %v1169 = vpow.pop %v1168
        %v1170 = vmul.f32 %v1146, 1.442695
        %v1171 = vpow.pop %v1170
        %v1172 = vmul.f32 %v1147, 1.442695
        %v1173 = vpow.pop %v1172
        %v1174 = vmul.f32 %v1148, 1.442695
        %v1175 = vpow.pop %v1174
        %v1176 = vmul.f32 %v1149, 1.442695
        %v1177 = vpow.pop %v1176
        %v1178 = vmul.f32 %v1150, 1.442695
        %v1179 = vpow.pop %v1178
        %v1180 = vmul.f32 %v1151, 1.442695
        %v1181 = vpow.pop %v1180
        %v1182 = vmul.f32 %v1152, 1.442695
        %v1183 = vpow.pop %v1182
        %v1184 = vmul.f32 %v1153, 1.442695
        %v1185 = vpow.pop %v1184
        %v1186 = vadd.f32 %v1155, %v1157
        %v1187 = vadd.f32 %v1186, %v1159
        %v1188 = vadd.f32 %v1187, %v1161
        %v1189 = vadd.f32 %v1188, %v1163
        %v1190 = vadd.f32 %v1189, %v1165
        %v1191 = vadd.f32 %v1190, %v1167
        %v1192 = vadd.f32 %v1191, %v1169
        %v1193 = vadd.f32 %v1192, %v1171
        %v1194 = vadd.f32 %v1193, %v1173
        %v1195 = vadd.f32 %v1194, %v1175
        %v1196 = vadd.f32 %v1195, %v1177
        %v1197 = vadd.f32 %v1196, %v1179
        %v1198 = vadd.f32 %v1197, %v1181
        %v1199 = vadd.f32 %v1198, %v1183
        %v1200 = vadd.f32 %v1199, %v1185
        %v1201 = vrot.slane %v1200, 4
        %v1202 = vadd.f32 %v1200, %v1201
        %v1203 = vrot.slane %v1202, 2
        %v1204 = vadd.f32 %v1202, %v1203
        %v1205 = vrot.slane %v1204, 1
        %v1206 = vadd.f32 %v1204, %v1205
        %v1207 = vrcp.pop %v1206
        %v1208 = vmul.f32 %v1155, %v1207
        %v1209 = vmul.f32 %v1157, %v1207
        %v1210 = vmul.f32 %v1159, %v1207
        %v1211 = vmul.f32 %v1161, %v1207
        %v1212 = vmul.f32 %v1163, %v1207
        %v1213 = vmul.f32 %v1165, %v1207
        %v1214 = vmul.f32 %v1167, %v1207
        %v1215 = vmul.f32 %v1169, %v1207
        %v1216 = vmul.f32 %v1171, %v1207
        %v1217 = vmul.f32 %v1173, %v1207
        %v1218 = vmul.f32 %v1175, %v1207
        %v1219 = vmul.f32 %v1177, %v1207
        %v1220 = vmul.f32 %v1179, %v1207
        %v1221 = vmul.f32 %v1181, %v1207
        %v1222 = vmul.f32 %v1183, %v1207
        %v1223 = vmul.f32 %v1185, %v1207
        %v1224 = vmul.f32 %v1208, %v939
        %v1225 = vmul.f32 %v1209, %v940
        %v1226 = vmul.f32 %v1210, %v941
        %v1227 = vmul.f32 %v1211, %v942
        %v1228 = vmul.f32 %v1212, %v943
        %v1229 = vmul.f32 %v1213, %v944
        %v1230 = vmul.f32 %v1214, %v945
        %v1231 = vmul.f32 %v1215, %v946
        %v1232 = vmul.f32 %v1216, %v947
        %v1233 = vmul.f32 %v1217, %v948
        %v1234 = vmul.f32 %v1218, %v949
        %v1235 = vmul.f32 %v1219, %v950
        %v1236 = vmul.f32 %v1220, %v951
        %v1237 = vmul.f32 %v1221, %v952
        %v1238 = vmul.f32 %v1222, %v953
        %v1239 = vmul.f32 %v1223, %v954
        %s1240 = scalar_lea.vmem %s2, 256
        %v1241 = vld [vmem:[%s1240] sm:$0xff]
        %v1242 = vld [vmem:[%s1240 + $0x8] sm:$0xff]
        %v1243 = vld [vmem:[%s1240 + $0x10] sm:$0xff]
        %v1244 = vld [vmem:[%s1240 + $0x18] sm:$0xff]
        %v1245 = vld [vmem:[%s1240 + $0x20] sm:$0xff]
        %v1246 = vld [vmem:[%s1240 + $0x28] sm:$0xff]
        %v1247 = vld [vmem:[%s1240 + $0x30] sm:$0xff]
        %v1248 = vld [vmem:[%s1240 + $0x38] sm:$0xff]
        %v1249 = vld [vmem:[%s1240 + $0x40] sm:$0xff]
        %v1250 = vld [vmem:[%s1240 + $0x48] sm:$0xff]
        %v1251 = vld [vmem:[%s1240 + $0x50] sm:$0xff]
        %v1252 = vld [vmem:[%s1240 + $0x58] sm:$0xff]
        %v1253 = vld [vmem:[%s1240 + $0x60] sm:$0xff]
        %v1254 = vld [vmem:[%s1240 + $0x68] sm:$0xff]
        %v1255 = vld [vmem:[%s1240 + $0x70] sm:$0xff]
        %v1256 = vld [vmem:[%s1240 + $0x78] sm:$0xff]
        %v1257 = vadd.f32 %v1224, %v1241
        %v1258 = vadd.f32 %v1225, %v1242
        %v1259 = vadd.f32 %v1226, %v1243
        %v1260 = vadd.f32 %v1227, %v1244
        %v1261 = vadd.f32 %v1228, %v1245
        %v1262 = vadd.f32 %v1229, %v1246
        %v1263 = vadd.f32 %v1230, %v1247
        %v1264 = vadd.f32 %v1231, %v1248
        %v1265 = vadd.f32 %v1232, %v1249
        %v1266 = vadd.f32 %v1233, %v1250
        %v1267 = vadd.f32 %v1234, %v1251
        %v1268 = vadd.f32 %v1235, %v1252
        %v1269 = vadd.f32 %v1236, %v1253
        %v1270 = vadd.f32 %v1237, %v1254
        %v1271 = vadd.f32 %v1238, %v1255
        %v1272 = vadd.f32 %v1239, %v1256
        %v1273 = vld [vmem:[#allocation2] sm:$0xff]
        %v1274 = vld [vmem:[#allocation2 + $0x8] sm:$0xff]
        %v1275 = vld [vmem:[#allocation2 + $0x10] sm:$0xff]
        %v1276 = vld [vmem:[#allocation2 + $0x18] sm:$0xff]
        %v1277 = vld [vmem:[#allocation2 + $0x20] sm:$0xff]
        %v1278 = vld [vmem:[#allocation2 + $0x28] sm:$0xff]
        %v1279 = vld [vmem:[#allocation2 + $0x30] sm:$0xff]
        %v1280 = vld [vmem:[#allocation2 + $0x38] sm:$0xff]
        %v1281 = vld [vmem:[#allocation2 + $0x40] sm:$0xff]
        %v1282 = vld [vmem:[#allocation2 + $0x48] sm:$0xff]
        %v1283 = vld [vmem:[#allocation2 + $0x50] sm:$0xff]
        %v1284 = vld [vmem:[#allocation2 + $0x58] sm:$0xff]
        %1285 = vmatpush.msra.mxu0 %v1272
        %1286 = vmatpush.msra.mxu0 %v1271
        %1287 = vmatpush.msra.mxu0 %v1270
        %1288 = vmatpush.msra.mxu0 %v1269
        %1289 = vmatpush.msra.mxu0 %v1268
        %1290 = vmatpush.msra.mxu0 %v1267
        %1291 = vmatpush.msra.mxu0 %v1266
        %1292 = vmatpush.msra.mxu0 %v1265
        %1293 = vmatpush.msra.mxu0 %v1264
        %1294 = vmatpush.msra.mxu0 %v1263
        %1295 = vmatpush.msra.mxu0 %v1262
        %1296 = vmatpush.msra.mxu0 %v1261
        %1297 = vmatpush.msra.mxu0 %v1260
        %1298 = vmatpush.msra.mxu0 %v1259
        %1299 = vmatpush.msra.mxu0 %v1258
        %1300 = vmatpush.msra.mxu0 %v1257
        %1301 = vmatmul.f32.gmra.mxu0 %v1273
        %v1302 = vpop.f32.mrf.mxu0
        %v1303 = vadd.f32 0.0, %v1302
        %1304 = vmatmul.f32.gmra.mxu0 %v1274
        %v1305 = vpop.f32.mrf.mxu0
        %v1306 = vadd.f32 0.0, %v1305
        %1307 = vmatmul.f32.gmra.mxu0 %v1275
        %v1308 = vpop.f32.mrf.mxu0
        %v1309 = vadd.f32 0.0, %v1308
        %1310 = vmatmul.f32.gmra.mxu0 %v1276
        %v1311 = vpop.f32.mrf.mxu0
        %v1312 = vadd.f32 0.0, %v1311
        %1313 = vmatmul.f32.gmra.mxu0 %v1277
        %v1314 = vpop.f32.mrf.mxu0
        %v1315 = vadd.f32 0.0, %v1314
        %1316 = vmatmul.f32.gmra.mxu0 %v1278
        %v1317 = vpop.f32.mrf.mxu0
        %v1318 = vadd.f32 0.0, %v1317
        %1319 = vmatmul.f32.gmra.mxu0 %v1279
        %v1320 = vpop.f32.mrf.mxu0
        %v1321 = vadd.f32 0.0, %v1320
        %1322 = vmatmul.f32.gmra.mxu0 %v1280
        %v1323 = vpop.f32.mrf.mxu0
        %v1324 = vadd.f32 0.0, %v1323
        %1325 = vmatmul.f32.gmra.mxu0 %v1281
        %v1326 = vpop.f32.mrf.mxu0
        %v1327 = vadd.f32 0.0, %v1326
        %1328 = vmatmul.f32.gmra.mxu0 %v1282
        %v1329 = vpop.f32.mrf.mxu0
        %v1330 = vadd.f32 0.0, %v1329
        %1331 = vmatmul.f32.gmra.mxu0 %v1283
        %v1332 = vpop.f32.mrf.mxu0
        %v1333 = vadd.f32 0.0, %v1332
        %1334 = vmatmul.f32.gmra.mxu0 %v1284
        %v1335 = vpop.f32.mrf.mxu0
        %v1336 = vadd.f32 0.0, %v1335
        %1337 = vdwg.mxu0
        %v1338 = vadd.f32 %v955, %v1303
        %v1339 = vadd.f32 %v956, %v1306
        %v1340 = vadd.f32 %v957, %v1309
        %v1341 = vadd.f32 %v958, %v1312
        %v1342 = vadd.f32 %v959, %v1315
        %v1343 = vadd.f32 %v960, %v1318
        %v1344 = vadd.f32 %v961, %v1321
        %v1345 = vadd.f32 %v962, %v1324
        %v1346 = vadd.f32 %v963, %v1327
        %v1347 = vadd.f32 %v964, %v1330
        %v1348 = vadd.f32 %v965, %v1333
        %v1349 = vadd.f32 %v966, %v1336
        %v1350 = vld [vmem:[#allocation2 + $0x228] sm:$0xff]
        %v1351 = vld [vmem:[#allocation2 + $0x230] sm:$0xff]
        %v1352 = vld [vmem:[#allocation2 + $0x258] sm:$0xff]
        %v1353 = vld [vmem:[#allocation2 + $0x260] sm:$0xff]
        %1354 = vxpose.xlu0.b32.start [1/16] %v1350, 128
        %1355 = vxpose.xlu0.b32.cont [2/16] %v1351, 128
        %1356 = vxpose.xlu0.b32.cont [3/16] 0.0, 128
        %1357 = vxpose.xlu0.b32.cont [4/16] 0.0, 128
        %1358 = vxpose.xlu0.b32.cont [5/16] 0.0, 128
        %1359 = vxpose.xlu0.b32.cont [6/16] 0.0, 128
        %1360 = vxpose.xlu0.b32.cont [7/16] 0.0, 128
        %1361 = vxpose.xlu0.b32.cont [8/16] 0.0, 128
        %1362 = vxpose.xlu0.b32.cont [9/16] 0.0, 128
        %1363 = vxpose.xlu0.b32.cont [10/16] 0.0, 128
        %1364 = vxpose.xlu0.b32.cont [11/16] 0.0, 128
        %1365 = vxpose.xlu0.b32.cont [12/16] 0.0, 128
        %1366 = vxpose.xlu0.b32.cont [13/16] 0.0, 128
        %1367 = vxpose.xlu0.b32.cont [14/16] 0.0, 128
        %1368 = vxpose.xlu0.b32.cont [15/16] 0.0, 128
        %1369 = vxpose.xlu0.b32.end [16/16] 0.0, 128
        %v1370 = vpop.trf.xlu0
        %v1371 = vpop.trf.xlu0
        %v1372 = vpop.trf.xlu0
        %v1373 = vpop.trf.xlu0
        %v1374 = vpop.trf.xlu0
        %v1375 = vpop.trf.xlu0
        %v1376 = vpop.trf.xlu0
        %v1377 = vpop.trf.xlu0
        %v1378 = vpop.trf.xlu0
        %v1379 = vpop.trf.xlu0
        %v1380 = vpop.trf.xlu0
        %v1381 = vpop.trf.xlu0
        %v1382 = vpop.trf.xlu0
        %v1383 = vpop.trf.xlu0
        %v1384 = vpop.trf.xlu0
        %v1385 = vpop.trf.xlu0
        %v1387 = vsel %vm1003, %v1370, 0
        %v1390 = vsel %vm1003, %v1371, 0
        %v1393 = vsel %vm1003, %v1372, 0
        %v1396 = vsel %vm1003, %v1373, 0
        %v1399 = vsel %vm1003, %v1374, 0
        %v1402 = vsel %vm1003, %v1375, 0
        %v1405 = vsel %vm1003, %v1376, 0
        %v1408 = vsel %vm1003, %v1377, 0
        %v1411 = vsel %vm1003, %v1378, 0
        %v1414 = vsel %vm1003, %v1379, 0
        %v1417 = vsel %vm1003, %v1380, 0
        %v1420 = vsel %vm1003, %v1381, 0
        %v1423 = vsel %vm1003, %v1382, 0
        %v1426 = vsel %vm1003, %v1383, 0
        %v1429 = vsel %vm1003, %v1384, 0
        %v1432 = vsel %vm1003, %v1385, 0
        %1434 = vmatpush.msra.mxu0 0.0
        %1435 = vmatpush.msra.mxu0 0.0
        %1436 = vmatpush.msra.mxu0 0.0
        %1437 = vmatpush.msra.mxu0 0.0
        %1438 = vmatpush.msra.mxu0 0.0
        %1439 = vmatpush.msra.mxu0 0.0
        %1440 = vmatpush.msra.mxu0 0.0
        %1441 = vmatpush.msra.mxu0 0.0
        %1442 = vmatpush.msra.mxu0 0.0
        %1443 = vmatpush.msra.mxu0 0.0
        %1444 = vmatpush.msra.mxu0 0.0
        %1445 = vmatpush.msra.mxu0 0.0
        %1446 = vmatpush.msra.mxu0 0.0
        %1447 = vmatpush.msra.mxu0 0.0
        %1448 = vmatpush.msra.mxu0 %v1353
        %1449 = vmatpush.msra.mxu0 %v1352
        %1450 = vmatmul.f32.gmra.mxu0 %v1387
        %v1451 = vpop.f32.mrf.mxu0
        %v1452 = vadd.f32 %v922, %v1451
        %1453 = vmatmul.f32.gmra.mxu0 %v1390
        %v1454 = vpop.f32.mrf.mxu0
        %v1455 = vadd.f32 %v923, %v1454
        %1456 = vmatmul.f32.gmra.mxu0 %v1393
        %v1457 = vpop.f32.mrf.mxu0
        %v1458 = vadd.f32 %v924, %v1457
        %1459 = vmatmul.f32.gmra.mxu0 %v1396
        %v1460 = vpop.f32.mrf.mxu0
        %v1461 = vadd.f32 %v925, %v1460
        %1462 = vmatmul.f32.gmra.mxu0 %v1399
        %v1463 = vpop.f32.mrf.mxu0
        %v1464 = vadd.f32 %v926, %v1463
        %1465 = vmatmul.f32.gmra.mxu0 %v1402
        %v1466 = vpop.f32.mrf.mxu0
        %v1467 = vadd.f32 %v927, %v1466
        %1468 = vmatmul.f32.gmra.mxu0 %v1405
        %v1469 = vpop.f32.mrf.mxu0
        %v1470 = vadd.f32 %v928, %v1469
        %1471 = vmatmul.f32.gmra.mxu0 %v1408
        %v1472 = vpop.f32.mrf.mxu0
        %v1473 = vadd.f32 %v929, %v1472
        %1474 = vmatmul.f32.gmra.mxu0 %v1411
        %v1475 = vpop.f32.mrf.mxu0
        %v1476 = vadd.f32 %v930, %v1475
        %1477 = vmatmul.f32.gmra.mxu0 %v1414
        %v1478 = vpop.f32.mrf.mxu0
        %v1479 = vadd.f32 %v931, %v1478
        %1480 = vmatmul.f32.gmra.mxu0 %v1417
        %v1481 = vpop.f32.mrf.mxu0
        %v1482 = vadd.f32 %v932, %v1481
        %1483 = vmatmul.f32.gmra.mxu0 %v1420
        %v1484 = vpop.f32.mrf.mxu0
        %v1485 = vadd.f32 %v933, %v1484
        %1486 = vmatmul.f32.gmra.mxu0 %v1423
        %v1487 = vpop.f32.mrf.mxu0
        %v1488 = vadd.f32 %v934, %v1487
        %1489 = vmatmul.f32.gmra.mxu0 %v1426
        %v1490 = vpop.f32.mrf.mxu0
        %v1491 = vadd.f32 %v935, %v1490
        %1492 = vmatmul.f32.gmra.mxu0 %v1429
        %v1493 = vpop.f32.mrf.mxu0
        %v1494 = vadd.f32 %v936, %v1493
        %1495 = vmatmul.f32.gmra.mxu0 %v1432
        %v1496 = vpop.f32.mrf.mxu0
        %v1497 = vadd.f32 %v937, %v1496
        %1498 = vdwg.mxu0
        %v1499 = vmax.f32 %v1452, %v1464
        %v1500 = vmax.f32 %v1455, %v1467
        %v1501 = vmax.f32 %v1458, %v1470
        %v1502 = vmax.f32 %v1461, %v1473
        %v1503 = vmax.f32 %v1499, %v1476
        %v1504 = vmax.f32 %v1500, %v1479
        %v1505 = vmax.f32 %v1501, %v1482
        %v1506 = vmax.f32 %v1502, %v1485
        %v1507 = vmax.f32 %v1503, %v1488
        %v1508 = vmax.f32 %v1504, %v1491
        %v1509 = vmax.f32 %v1505, %v1494
        %v1510 = vmax.f32 %v1506, %v1497
        %v1511 = vmax.f32 %v1507, %v1508
        %v1512 = vmax.f32 %v1509, %v1510
        %v1513 = vmax.f32 %v1511, %v1512
        %v1514 = vrot.slane %v1513, 4
        %v1515 = vmax.f32 %v1513, %v1514
        %v1516 = vrot.slane %v1515, 2
        %v1517 = vmax.f32 %v1515, %v1516
        %v1518 = vrot.slane %v1517, 1
        %v1519 = vmax.f32 %v1517, %v1518
        %v1520 = vsub.f32 %v1452, %v1519
        %v1521 = vsub.f32 %v1455, %v1519
        %v1522 = vsub.f32 %v1458, %v1519
        %v1523 = vsub.f32 %v1461, %v1519
        %v1524 = vsub.f32 %v1464, %v1519
        %v1525 = vsub.f32 %v1467, %v1519
        %v1526 = vsub.f32 %v1470, %v1519
        %v1527 = vsub.f32 %v1473, %v1519
        %v1528 = vsub.f32 %v1476, %v1519
        %v1529 = vsub.f32 %v1479, %v1519
        %v1530 = vsub.f32 %v1482, %v1519
        %v1531 = vsub.f32 %v1485, %v1519
        %v1532 = vsub.f32 %v1488, %v1519
        %v1533 = vsub.f32 %v1491, %v1519
        %v1534 = vsub.f32 %v1494, %v1519
        %v1535 = vsub.f32 %v1497, %v1519
        %v1536 = vmul.f32 %v1520, 1.442695
        %v1537 = vpow.pop %v1536
        %v1538 = vmul.f32 %v1521, 1.442695
        %v1539 = vpow.pop %v1538
        %v1540 = vmul.f32 %v1522, 1.442695
        %v1541 = vpow.pop %v1540
        %v1542 = vmul.f32 %v1523, 1.442695
        %v1543 = vpow.pop %v1542
        %v1544 = vmul.f32 %v1524, 1.442695
        %v1545 = vpow.pop %v1544
        %v1546 = vmul.f32 %v1525, 1.442695
        %v1547 = vpow.pop %v1546
        %v1548 = vmul.f32 %v1526, 1.442695
        %v1549 = vpow.pop %v1548
        %v1550 = vmul.f32 %v1527, 1.442695
        %v1551 = vpow.pop %v1550
        %v1552 = vmul.f32 %v1528, 1.442695
        %v1553 = vpow.pop %v1552
        %v1554 = vmul.f32 %v1529, 1.442695
        %v1555 = vpow.pop %v1554
        %v1556 = vmul.f32 %v1530, 1.442695
        %v1557 = vpow.pop %v1556
        %v1558 = vmul.f32 %v1531, 1.442695
        %v1559 = vpow.pop %v1558
        %v1560 = vmul.f32 %v1532, 1.442695
        %v1561 = vpow.pop %v1560
        %v1562 = vmul.f32 %v1533, 1.442695
        %v1563 = vpow.pop %v1562
        %v1564 = vmul.f32 %v1534, 1.442695
        %v1565 = vpow.pop %v1564
        %v1566 = vmul.f32 %v1535, 1.442695
        %v1567 = vpow.pop %v1566
        %v1568 = vadd.f32 %v1537, %v1539
        %v1569 = vadd.f32 %v1568, %v1541
        %v1570 = vadd.f32 %v1569, %v1543
        %v1571 = vadd.f32 %v1570, %v1545
        %v1572 = vadd.f32 %v1571, %v1547
        %v1573 = vadd.f32 %v1572, %v1549
        %v1574 = vadd.f32 %v1573, %v1551
        %v1575 = vadd.f32 %v1574, %v1553
        %v1576 = vadd.f32 %v1575, %v1555
        %v1577 = vadd.f32 %v1576, %v1557
        %v1578 = vadd.f32 %v1577, %v1559
        %v1579 = vadd.f32 %v1578, %v1561
        %v1580 = vadd.f32 %v1579, %v1563
        %v1581 = vadd.f32 %v1580, %v1565
        %v1582 = vadd.f32 %v1581, %v1567
        %v1583 = vrot.slane %v1582, 4
        %v1584 = vadd.f32 %v1582, %v1583
        %v1585 = vrot.slane %v1584, 2
        %v1586 = vadd.f32 %v1584, %v1585
        %v1587 = vrot.slane %v1586, 1
        %v1588 = vadd.f32 %v1586, %v1587
        %v1589 = vrcp.pop %v1588
        %v1590 = vmul.f32 %v1537, %v1589
        %v1591 = vmul.f32 %v1539, %v1589
        %v1592 = vmul.f32 %v1541, %v1589
        %v1593 = vmul.f32 %v1543, %v1589
        %v1594 = vmul.f32 %v1545, %v1589
        %v1595 = vmul.f32 %v1547, %v1589
        %v1596 = vmul.f32 %v1549, %v1589
        %v1597 = vmul.f32 %v1551, %v1589
        %v1598 = vmul.f32 %v1553, %v1589
        %v1599 = vmul.f32 %v1555, %v1589
        %v1600 = vmul.f32 %v1557, %v1589
        %v1601 = vmul.f32 %v1559, %v1589
        %v1602 = vmul.f32 %v1561, %v1589
        %v1603 = vmul.f32 %v1563, %v1589
        %v1604 = vmul.f32 %v1565, %v1589
        %v1605 = vmul.f32 %v1567, %v1589
        %v1606 = vmul.f32 %v1590, %v939
        %v1607 = vmul.f32 %v1591, %v940
        %v1608 = vmul.f32 %v1592, %v941
        %v1609 = vmul.f32 %v1593, %v942
        %v1610 = vmul.f32 %v1594, %v943
        %v1611 = vmul.f32 %v1595, %v944
        %v1612 = vmul.f32 %v1596, %v945
        %v1613 = vmul.f32 %v1597, %v946
        %v1614 = vmul.f32 %v1598, %v947
        %v1615 = vmul.f32 %v1599, %v948
        %v1616 = vmul.f32 %v1600, %v949
        %v1617 = vmul.f32 %v1601, %v950
        %v1618 = vmul.f32 %v1602, %v951
        %v1619 = vmul.f32 %v1603, %v952
        %v1620 = vmul.f32 %v1604, %v953
        %v1621 = vmul.f32 %v1605, %v954
        %s1622 = scalar_lea.vmem %s2, 384
        %v1623 = vld [vmem:[%s1622] sm:$0xff]
        %v1624 = vld [vmem:[%s1622 + $0x8] sm:$0xff]
        %v1625 = vld [vmem:[%s1622 + $0x10] sm:$0xff]
        %v1626 = vld [vmem:[%s1622 + $0x18] sm:$0xff]
        %v1627 = vld [vmem:[%s1622 + $0x20] sm:$0xff]
        %v1628 = vld [vmem:[%s1622 + $0x28] sm:$0xff]
        %v1629 = vld [vmem:[%s1622 + $0x30] sm:$0xff]
        %v1630 = vld [vmem:[%s1622 + $0x38] sm:$0xff]
        %v1631 = vld [vmem:[%s1622 + $0x40] sm:$0xff]
        %v1632 = vld [vmem:[%s1622 + $0x48] sm:$0xff]
        %v1633 = vld [vmem:[%s1622 + $0x50] sm:$0xff]
        %v1634 = vld [vmem:[%s1622 + $0x58] sm:$0xff]
        %v1635 = vld [vmem:[%s1622 + $0x60] sm:$0xff]
        %v1636 = vld [vmem:[%s1622 + $0x68] sm:$0xff]
        %v1637 = vld [vmem:[%s1622 + $0x70] sm:$0xff]
        %v1638 = vld [vmem:[%s1622 + $0x78] sm:$0xff]
        %v1639 = vadd.f32 %v1606, %v1623
        %v1640 = vadd.f32 %v1607, %v1624
        %v1641 = vadd.f32 %v1608, %v1625
        %v1642 = vadd.f32 %v1609, %v1626
        %v1643 = vadd.f32 %v1610, %v1627
        %v1644 = vadd.f32 %v1611, %v1628
        %v1645 = vadd.f32 %v1612, %v1629
        %v1646 = vadd.f32 %v1613, %v1630
        %v1647 = vadd.f32 %v1614, %v1631
        %v1648 = vadd.f32 %v1615, %v1632
        %v1649 = vadd.f32 %v1616, %v1633
        %v1650 = vadd.f32 %v1617, %v1634
        %v1651 = vadd.f32 %v1618, %v1635
        %v1652 = vadd.f32 %v1619, %v1636
        %v1653 = vadd.f32 %v1620, %v1637
        %v1654 = vadd.f32 %v1621, %v1638
        %v1655 = vld [vmem:[#allocation2 + $0x60] sm:$0xff]
        %v1656 = vld [vmem:[#allocation2 + $0x68] sm:$0xff]
        %v1657 = vld [vmem:[#allocation2 + $0x70] sm:$0xff]
        %v1658 = vld [vmem:[#allocation2 + $0x78] sm:$0xff]
        %v1659 = vld [vmem:[#allocation2 + $0x80] sm:$0xff]
        %v1660 = vld [vmem:[#allocation2 + $0x88] sm:$0xff]
        %v1661 = vld [vmem:[#allocation2 + $0x90] sm:$0xff]
        %v1662 = vld [vmem:[#allocation2 + $0x98] sm:$0xff]
        %v1663 = vld [vmem:[#allocation2 + $0xa0] sm:$0xff]
        %v1664 = vld [vmem:[#allocation2 + $0xa8] sm:$0xff]
        %v1665 = vld [vmem:[#allocation2 + $0xb0] sm:$0xff]
        %v1666 = vld [vmem:[#allocation2 + $0xb8] sm:$0xff]
        %1667 = vmatpush.msra.mxu0 %v1654
        %1668 = vmatpush.msra.mxu0 %v1653
        %1669 = vmatpush.msra.mxu0 %v1652
        %1670 = vmatpush.msra.mxu0 %v1651
        %1671 = vmatpush.msra.mxu0 %v1650
        %1672 = vmatpush.msra.mxu0 %v1649
        %1673 = vmatpush.msra.mxu0 %v1648
        %1674 = vmatpush.msra.mxu0 %v1647
        %1675 = vmatpush.msra.mxu0 %v1646
        %1676 = vmatpush.msra.mxu0 %v1645
        %1677 = vmatpush.msra.mxu0 %v1644
        %1678 = vmatpush.msra.mxu0 %v1643
        %1679 = vmatpush.msra.mxu0 %v1642
        %1680 = vmatpush.msra.mxu0 %v1641
        %1681 = vmatpush.msra.mxu0 %v1640
        %1682 = vmatpush.msra.mxu0 %v1639
        %1683 = vmatmul.f32.gmra.mxu0 %v1655
        %v1684 = vpop.f32.mrf.mxu0
        %v1685 = vadd.f32 0.0, %v1684
        %1686 = vmatmul.f32.gmra.mxu0 %v1656
        %v1687 = vpop.f32.mrf.mxu0
        %v1688 = vadd.f32 0.0, %v1687
        %1689 = vmatmul.f32.gmra.mxu0 %v1657
        %v1690 = vpop.f32.mrf.mxu0
        %v1691 = vadd.f32 0.0, %v1690
        %1692 = vmatmul.f32.gmra.mxu0 %v1658
        %v1693 = vpop.f32.mrf.mxu0
        %v1694 = vadd.f32 0.0, %v1693
        %1695 = vmatmul.f32.gmra.mxu0 %v1659
        %v1696 = vpop.f32.mrf.mxu0
        %v1697 = vadd.f32 0.0, %v1696
        %1698 = vmatmul.f32.gmra.mxu0 %v1660
        %v1699 = vpop.f32.mrf.mxu0
        %v1700 = vadd.f32 0.0, %v1699
        %1701 = vmatmul.f32.gmra.mxu0 %v1661
        %v1702 = vpop.f32.mrf.mxu0
        %v1703 = vadd.f32 0.0, %v1702
        %1704 = vmatmul.f32.gmra.mxu0 %v1662
        %v1705 = vpop.f32.mrf.mxu0
        %v1706 = vadd.f32 0.0, %v1705
        %1707 = vmatmul.f32.gmra.mxu0 %v1663
        %v1708 = vpop.f32.mrf.mxu0
        %v1709 = vadd.f32 0.0, %v1708
        %1710 = vmatmul.f32.gmra.mxu0 %v1664
        %v1711 = vpop.f32.mrf.mxu0
        %v1712 = vadd.f32 0.0, %v1711
        %1713 = vmatmul.f32.gmra.mxu0 %v1665
        %v1714 = vpop.f32.mrf.mxu0
        %v1715 = vadd.f32 0.0, %v1714
        %1716 = vmatmul.f32.gmra.mxu0 %v1666
        %v1717 = vpop.f32.mrf.mxu0
        %v1718 = vadd.f32 0.0, %v1717
        %1719 = vdwg.mxu0
        %v1720 = vadd.f32 %v1338, %v1685
        %v1721 = vadd.f32 %v1339, %v1688
        %v1722 = vadd.f32 %v1340, %v1691
        %v1723 = vadd.f32 %v1341, %v1694
        %v1724 = vadd.f32 %v1342, %v1697
        %v1725 = vadd.f32 %v1343, %v1700
        %v1726 = vadd.f32 %v1344, %v1703
        %v1727 = vadd.f32 %v1345, %v1706
        %v1728 = vadd.f32 %v1346, %v1709
        %v1729 = vadd.f32 %v1347, %v1712
        %v1730 = vadd.f32 %v1348, %v1715
        %v1731 = vadd.f32 %v1349, %v1718
        %v1732 = vld [vmem:[#allocation2 + $0x238] sm:$0xff]
        %v1733 = vld [vmem:[#allocation2 + $0x240] sm:$0xff]
        %v1734 = vld [vmem:[#allocation2 + $0x268] sm:$0xff]
        %v1735 = vld [vmem:[#allocation2 + $0x270] sm:$0xff]
        %1736 = vxpose.xlu0.b32.start [1/16] %v1732, 128
        %1737 = vxpose.xlu0.b32.cont [2/16] %v1733, 128
        %1738 = vxpose.xlu0.b32.cont [3/16] 0.0, 128
        %1739 = vxpose.xlu0.b32.cont [4/16] 0.0, 128
        %1740 = vxpose.xlu0.b32.cont [5/16] 0.0, 128
        %1741 = vxpose.xlu0.b32.cont [6/16] 0.0, 128
        %1742 = vxpose.xlu0.b32.cont [7/16] 0.0, 128
        %1743 = vxpose.xlu0.b32.cont [8/16] 0.0, 128
        %1744 = vxpose.xlu0.b32.cont [9/16] 0.0, 128
        %1745 = vxpose.xlu0.b32.cont [10/16] 0.0, 128
        %1746 = vxpose.xlu0.b32.cont [11/16] 0.0, 128
        %1747 = vxpose.xlu0.b32.cont [12/16] 0.0, 128
        %1748 = vxpose.xlu0.b32.cont [13/16] 0.0, 128
        %1749 = vxpose.xlu0.b32.cont [14/16] 0.0, 128
        %1750 = vxpose.xlu0.b32.cont [15/16] 0.0, 128
        %1751 = vxpose.xlu0.b32.end [16/16] 0.0, 128
        %v1752 = vpop.trf.xlu0
        %v1753 = vpop.trf.xlu0
        %v1754 = vpop.trf.xlu0
        %v1755 = vpop.trf.xlu0
        %v1756 = vpop.trf.xlu0
        %v1757 = vpop.trf.xlu0
        %v1758 = vpop.trf.xlu0
        %v1759 = vpop.trf.xlu0
        %v1760 = vpop.trf.xlu0
        %v1761 = vpop.trf.xlu0
        %v1762 = vpop.trf.xlu0
        %v1763 = vpop.trf.xlu0
        %v1764 = vpop.trf.xlu0
        %v1765 = vpop.trf.xlu0
        %v1766 = vpop.trf.xlu0
        %v1767 = vpop.trf.xlu0
        %v1769 = vsel %vm1003, %v1752, 0
        %v1772 = vsel %vm1003, %v1753, 0
        %v1775 = vsel %vm1003, %v1754, 0
        %v1778 = vsel %vm1003, %v1755, 0
        %v1781 = vsel %vm1003, %v1756, 0
        %v1784 = vsel %vm1003, %v1757, 0
        %v1787 = vsel %vm1003, %v1758, 0
        %v1790 = vsel %vm1003, %v1759, 0
        %v1793 = vsel %vm1003, %v1760, 0
        %v1796 = vsel %vm1003, %v1761, 0
        %v1799 = vsel %vm1003, %v1762, 0
        %v1802 = vsel %vm1003, %v1763, 0
        %v1805 = vsel %vm1003, %v1764, 0
        %v1808 = vsel %vm1003, %v1765, 0
        %v1811 = vsel %vm1003, %v1766, 0
        %v1814 = vsel %vm1003, %v1767, 0
        %1816 = vmatpush.msra.mxu0 0.0
        %1817 = vmatpush.msra.mxu0 0.0
        %1818 = vmatpush.msra.mxu0 0.0
        %1819 = vmatpush.msra.mxu0 0.0
        %1820 = vmatpush.msra.mxu0 0.0
        %1821 = vmatpush.msra.mxu0 0.0
        %1822 = vmatpush.msra.mxu0 0.0
        %1823 = vmatpush.msra.mxu0 0.0
        %1824 = vmatpush.msra.mxu0 0.0
        %1825 = vmatpush.msra.mxu0 0.0
        %1826 = vmatpush.msra.mxu0 0.0
        %1827 = vmatpush.msra.mxu0 0.0
        %1828 = vmatpush.msra.mxu0 0.0
        %1829 = vmatpush.msra.mxu0 0.0
        %1830 = vmatpush.msra.mxu0 %v1735
        %1831 = vmatpush.msra.mxu0 %v1734
        %1832 = vmatmul.f32.gmra.mxu0 %v1769
        %v1833 = vpop.f32.mrf.mxu0
        %v1834 = vadd.f32 %v922, %v1833
        %1835 = vmatmul.f32.gmra.mxu0 %v1772
        %v1836 = vpop.f32.mrf.mxu0
        %v1837 = vadd.f32 %v923, %v1836
        %1838 = vmatmul.f32.gmra.mxu0 %v1775
        %v1839 = vpop.f32.mrf.mxu0
        %v1840 = vadd.f32 %v924, %v1839
        %1841 = vmatmul.f32.gmra.mxu0 %v1778
        %v1842 = vpop.f32.mrf.mxu0
        %v1843 = vadd.f32 %v925, %v1842
        %1844 = vmatmul.f32.gmra.mxu0 %v1781
        %v1845 = vpop.f32.mrf.mxu0
        %v1846 = vadd.f32 %v926, %v1845
        %1847 = vmatmul.f32.gmra.mxu0 %v1784
        %v1848 = vpop.f32.mrf.mxu0
        %v1849 = vadd.f32 %v927, %v1848
        %1850 = vmatmul.f32.gmra.mxu0 %v1787
        %v1851 = vpop.f32.mrf.mxu0
        %v1852 = vadd.f32 %v928, %v1851
        %1853 = vmatmul.f32.gmra.mxu0 %v1790
        %v1854 = vpop.f32.mrf.mxu0
        %v1855 = vadd.f32 %v929, %v1854
        %1856 = vmatmul.f32.gmra.mxu0 %v1793
        %v1857 = vpop.f32.mrf.mxu0
        %v1858 = vadd.f32 %v930, %v1857
        %1859 = vmatmul.f32.gmra.mxu0 %v1796
        %v1860 = vpop.f32.mrf.mxu0
        %v1861 = vadd.f32 %v931, %v1860
        %1862 = vmatmul.f32.gmra.mxu0 %v1799
        %v1863 = vpop.f32.mrf.mxu0
        %v1864 = vadd.f32 %v932, %v1863
        %1865 = vmatmul.f32.gmra.mxu0 %v1802
        %v1866 = vpop.f32.mrf.mxu0
        %v1867 = vadd.f32 %v933, %v1866
        %1868 = vmatmul.f32.gmra.mxu0 %v1805
        %v1869 = vpop.f32.mrf.mxu0
        %v1870 = vadd.f32 %v934, %v1869
        %1871 = vmatmul.f32.gmra.mxu0 %v1808
        %v1872 = vpop.f32.mrf.mxu0
        %v1873 = vadd.f32 %v935, %v1872
        %1874 = vmatmul.f32.gmra.mxu0 %v1811
        %v1875 = vpop.f32.mrf.mxu0
        %v1876 = vadd.f32 %v936, %v1875
        %1877 = vmatmul.f32.gmra.mxu0 %v1814
        %v1878 = vpop.f32.mrf.mxu0
        %v1879 = vadd.f32 %v937, %v1878
        %1880 = vdwg.mxu0
        %v1881 = vmax.f32 %v1834, %v1846
        %v1882 = vmax.f32 %v1837, %v1849
        %v1883 = vmax.f32 %v1840, %v1852
        %v1884 = vmax.f32 %v1843, %v1855
        %v1885 = vmax.f32 %v1881, %v1858
        %v1886 = vmax.f32 %v1882, %v1861
        %v1887 = vmax.f32 %v1883, %v1864
        %v1888 = vmax.f32 %v1884, %v1867
        %v1889 = vmax.f32 %v1885, %v1870
        %v1890 = vmax.f32 %v1886, %v1873
        %v1891 = vmax.f32 %v1887, %v1876
        %v1892 = vmax.f32 %v1888, %v1879
        %v1893 = vmax.f32 %v1889, %v1890
        %v1894 = vmax.f32 %v1891, %v1892
        %v1895 = vmax.f32 %v1893, %v1894
        %v1896 = vrot.slane %v1895, 4
        %v1897 = vmax.f32 %v1895, %v1896
        %v1898 = vrot.slane %v1897, 2
        %v1899 = vmax.f32 %v1897, %v1898
        %v1900 = vrot.slane %v1899, 1
        %v1901 = vmax.f32 %v1899, %v1900
        %v1902 = vsub.f32 %v1834, %v1901
        %v1903 = vsub.f32 %v1837, %v1901
        %v1904 = vsub.f32 %v1840, %v1901
        %v1905 = vsub.f32 %v1843, %v1901
        %v1906 = vsub.f32 %v1846, %v1901
        %v1907 = vsub.f32 %v1849, %v1901
        %v1908 = vsub.f32 %v1852, %v1901
        %v1909 = vsub.f32 %v1855, %v1901
        %v1910 = vsub.f32 %v1858, %v1901
        %v1911 = vsub.f32 %v1861, %v1901
        %v1912 = vsub.f32 %v1864, %v1901
        %v1913 = vsub.f32 %v1867, %v1901
        %v1914 = vsub.f32 %v1870, %v1901
        %v1915 = vsub.f32 %v1873, %v1901
        %v1916 = vsub.f32 %v1876, %v1901
        %v1917 = vsub.f32 %v1879, %v1901
        %v1918 = vmul.f32 %v1902, 1.442695
        %v1919 = vpow.pop %v1918
        %v1920 = vmul.f32 %v1903, 1.442695
        %v1921 = vpow.pop %v1920
        %v1922 = vmul.f32 %v1904, 1.442695
        %v1923 = vpow.pop %v1922
        %v1924 = vmul.f32 %v1905, 1.442695
        %v1925 = vpow.pop %v1924
        %v1926 = vmul.f32 %v1906, 1.442695
        %v1927 = vpow.pop %v1926
        %v1928 = vmul.f32 %v1907, 1.442695
        %v1929 = vpow.pop %v1928
        %v1930 = vmul.f32 %v1908, 1.442695
        %v1931 = vpow.pop %v1930
        %v1932 = vmul.f32 %v1909, 1.442695
        %v1933 = vpow.pop %v1932
        %v1934 = vmul.f32 %v1910, 1.442695
        %v1935 = vpow.pop %v1934
        %v1936 = vmul.f32 %v1911, 1.442695
        %v1937 = vpow.pop %v1936
        %v1938 = vmul.f32 %v1912, 1.442695
        %v1939 = vpow.pop %v1938
        %v1940 = vmul.f32 %v1913, 1.442695
        %v1941 = vpow.pop %v1940
        %v1942 = vmul.f32 %v1914, 1.442695
        %v1943 = vpow.pop %v1942
        %v1944 = vmul.f32 %v1915, 1.442695
        %v1945 = vpow.pop %v1944
        %v1946 = vmul.f32 %v1916, 1.442695
        %v1947 = vpow.pop %v1946
        %v1948 = vmul.f32 %v1917, 1.442695
        %v1949 = vpow.pop %v1948
        %v1950 = vadd.f32 %v1919, %v1921
        %v1951 = vadd.f32 %v1950, %v1923
        %v1952 = vadd.f32 %v1951, %v1925
        %v1953 = vadd.f32 %v1952, %v1927
        %v1954 = vadd.f32 %v1953, %v1929
        %v1955 = vadd.f32 %v1954, %v1931
        %v1956 = vadd.f32 %v1955, %v1933
        %v1957 = vadd.f32 %v1956, %v1935
        %v1958 = vadd.f32 %v1957, %v1937
        %v1959 = vadd.f32 %v1958, %v1939
        %v1960 = vadd.f32 %v1959, %v1941
        %v1961 = vadd.f32 %v1960, %v1943
        %v1962 = vadd.f32 %v1961, %v1945
        %v1963 = vadd.f32 %v1962, %v1947
        %v1964 = vadd.f32 %v1963, %v1949
        %v1965 = vrot.slane %v1964, 4
        %v1966 = vadd.f32 %v1964, %v1965
        %v1967 = vrot.slane %v1966, 2
        %v1968 = vadd.f32 %v1966, %v1967
        %v1969 = vrot.slane %v1968, 1
        %v1970 = vadd.f32 %v1968, %v1969
        %v1971 = vrcp.pop %v1970
        %v1972 = vmul.f32 %v1919, %v1971
        %v1973 = vmul.f32 %v1921, %v1971
        %v1974 = vmul.f32 %v1923, %v1971
        %v1975 = vmul.f32 %v1925, %v1971
        %v1976 = vmul.f32 %v1927, %v1971
        %v1977 = vmul.f32 %v1929, %v1971
        %v1978 = vmul.f32 %v1931, %v1971
        %v1979 = vmul.f32 %v1933, %v1971
        %v1980 = vmul.f32 %v1935, %v1971
        %v1981 = vmul.f32 %v1937, %v1971
        %v1982 = vmul.f32 %v1939, %v1971
        %v1983 = vmul.f32 %v1941, %v1971
        %v1984 = vmul.f32 %v1943, %v1971
        %v1985 = vmul.f32 %v1945, %v1971
        %v1986 = vmul.f32 %v1947, %v1971
        %v1987 = vmul.f32 %v1949, %v1971
        %v1988 = vmul.f32 %v1972, %v939
        %v1989 = vmul.f32 %v1973, %v940
        %v1990 = vmul.f32 %v1974, %v941
        %v1991 = vmul.f32 %v1975, %v942
        %v1992 = vmul.f32 %v1976, %v943
        %v1993 = vmul.f32 %v1977, %v944
        %v1994 = vmul.f32 %v1978, %v945
        %v1995 = vmul.f32 %v1979, %v946
        %v1996 = vmul.f32 %v1980, %v947
        %v1997 = vmul.f32 %v1981, %v948
        %v1998 = vmul.f32 %v1982, %v949
        %v1999 = vmul.f32 %v1983, %v950
        %v2000 = vmul.f32 %v1984, %v951
        %v2001 = vmul.f32 %v1985, %v952
        %v2002 = vmul.f32 %v1986, %v953
        %v2003 = vmul.f32 %v1987, %v954
        %s2004 = scalar_lea.vmem %s2, 512
        %v2005 = vld [vmem:[%s2004] sm:$0xff]
        %v2006 = vld [vmem:[%s2004 + $0x8] sm:$0xff]
        %v2007 = vld [vmem:[%s2004 + $0x10] sm:$0xff]
        %v2008 = vld [vmem:[%s2004 + $0x18] sm:$0xff]
        %v2009 = vld [vmem:[%s2004 + $0x20] sm:$0xff]
        %v2010 = vld [vmem:[%s2004 + $0x28] sm:$0xff]
        %v2011 = vld [vmem:[%s2004 + $0x30] sm:$0xff]
        %v2012 = vld [vmem:[%s2004 + $0x38] sm:$0xff]
        %v2013 = vld [vmem:[%s2004 + $0x40] sm:$0xff]
        %v2014 = vld [vmem:[%s2004 + $0x48] sm:$0xff]
        %v2015 = vld [vmem:[%s2004 + $0x50] sm:$0xff]
        %v2016 = vld [vmem:[%s2004 + $0x58] sm:$0xff]
        %v2017 = vld [vmem:[%s2004 + $0x60] sm:$0xff]
        %v2018 = vld [vmem:[%s2004 + $0x68] sm:$0xff]
        %v2019 = vld [vmem:[%s2004 + $0x70] sm:$0xff]
        %v2020 = vld [vmem:[%s2004 + $0x78] sm:$0xff]
        %v2021 = vadd.f32 %v1988, %v2005
        %v2022 = vadd.f32 %v1989, %v2006
        %v2023 = vadd.f32 %v1990, %v2007
        %v2024 = vadd.f32 %v1991, %v2008
        %v2025 = vadd.f32 %v1992, %v2009
        %v2026 = vadd.f32 %v1993, %v2010
        %v2027 = vadd.f32 %v1994, %v2011
        %v2028 = vadd.f32 %v1995, %v2012
        %v2029 = vadd.f32 %v1996, %v2013
        %v2030 = vadd.f32 %v1997, %v2014
        %v2031 = vadd.f32 %v1998, %v2015
        %v2032 = vadd.f32 %v1999, %v2016
        %v2033 = vadd.f32 %v2000, %v2017
        %v2034 = vadd.f32 %v2001, %v2018
        %v2035 = vadd.f32 %v2002, %v2019
        %v2036 = vadd.f32 %v2003, %v2020
        %v2037 = vld [vmem:[#allocation2 + $0xc0] sm:$0xff]
        %v2038 = vld [vmem:[#allocation2 + $0xc8] sm:$0xff]
        %v2039 = vld [vmem:[#allocation2 + $0xd0] sm:$0xff]
        %v2040 = vld [vmem:[#allocation2 + $0xd8] sm:$0xff]
        %v2041 = vld [vmem:[#allocation2 + $0xe0] sm:$0xff]
        %v2042 = vld [vmem:[#allocation2 + $0xe8] sm:$0xff]
        %v2043 = vld [vmem:[#allocation2 + $0xf0] sm:$0xff]
        %v2044 = vld [vmem:[#allocation2 + $0xf8] sm:$0xff]
        %v2045 = vld [vmem:[#allocation2 + $0x100] sm:$0xff]
        %v2046 = vld [vmem:[#allocation2 + $0x108] sm:$0xff]
        %v2047 = vld [vmem:[#allocation2 + $0x110] sm:$0xff]
        %v2048 = vld [vmem:[#allocation2 + $0x118] sm:$0xff]
        %2049 = vmatpush.msra.mxu0 %v2036
        %2050 = vmatpush.msra.mxu0 %v2035
        %2051 = vmatpush.msra.mxu0 %v2034
        %2052 = vmatpush.msra.mxu0 %v2033
        %2053 = vmatpush.msra.mxu0 %v2032
        %2054 = vmatpush.msra.mxu0 %v2031
        %2055 = vmatpush.msra.mxu0 %v2030
        %2056 = vmatpush.msra.mxu0 %v2029
        %2057 = vmatpush.msra.mxu0 %v2028
        %2058 = vmatpush.msra.mxu0 %v2027
        %2059 = vmatpush.msra.mxu0 %v2026
        %2060 = vmatpush.msra.mxu0 %v2025
        %2061 = vmatpush.msra.mxu0 %v2024
        %2062 = vmatpush.msra.mxu0 %v2023
        %2063 = vmatpush.msra.mxu0 %v2022
        %2064 = vmatpush.msra.mxu0 %v2021
        %2065 = vmatmul.f32.gmra.mxu0 %v2037
        %v2066 = vpop.f32.mrf.mxu0
        %v2067 = vadd.f32 0.0, %v2066
        %2068 = vmatmul.f32.gmra.mxu0 %v2038
        %v2069 = vpop.f32.mrf.mxu0
        %v2070 = vadd.f32 0.0, %v2069
        %2071 = vmatmul.f32.gmra.mxu0 %v2039
        %v2072 = vpop.f32.mrf.mxu0
        %v2073 = vadd.f32 0.0, %v2072
        %2074 = vmatmul.f32.gmra.mxu0 %v2040
        %v2075 = vpop.f32.mrf.mxu0
        %v2076 = vadd.f32 0.0, %v2075
        %2077 = vmatmul.f32.gmra.mxu0 %v2041
        %v2078 = vpop.f32.mrf.mxu0
        %v2079 = vadd.f32 0.0, %v2078
        %2080 = vmatmul.f32.gmra.mxu0 %v2042
        %v2081 = vpop.f32.mrf.mxu0
        %v2082 = vadd.f32 0.0, %v2081
        %2083 = vmatmul.f32.gmra.mxu0 %v2043
        %v2084 = vpop.f32.mrf.mxu0
        %v2085 = vadd.f32 0.0, %v2084
        %2086 = vmatmul.f32.gmra.mxu0 %v2044
        %v2087 = vpop.f32.mrf.mxu0
        %v2088 = vadd.f32 0.0, %v2087
        %2089 = vmatmul.f32.gmra.mxu0 %v2045
        %v2090 = vpop.f32.mrf.mxu0
        %v2091 = vadd.f32 0.0, %v2090
        %2092 = vmatmul.f32.gmra.mxu0 %v2046
        %v2093 = vpop.f32.mrf.mxu0
        %v2094 = vadd.f32 0.0, %v2093
        %2095 = vmatmul.f32.gmra.mxu0 %v2047
        %v2096 = vpop.f32.mrf.mxu0
        %v2097 = vadd.f32 0.0, %v2096
        %2098 = vmatmul.f32.gmra.mxu0 %v2048
        %v2099 = vpop.f32.mrf.mxu0
        %v2100 = vadd.f32 0.0, %v2099
        %2101 = vdwg.mxu0
        %v2102 = vadd.f32 %v1720, %v2067
        %v2103 = vadd.f32 %v1721, %v2070
        %v2104 = vadd.f32 %v1722, %v2073
        %v2105 = vadd.f32 %v1723, %v2076
        %v2106 = vadd.f32 %v1724, %v2079
        %v2107 = vadd.f32 %v1725, %v2082
        %v2108 = vadd.f32 %v1726, %v2085
        %v2109 = vadd.f32 %v1727, %v2088
        %v2110 = vadd.f32 %v1728, %v2091
        %v2111 = vadd.f32 %v1729, %v2094
        %v2112 = vadd.f32 %v1730, %v2097
        %v2113 = vadd.f32 %v1731, %v2100
        %v2114 = vmax.f32 %v2102, 0.0
        %v2115 = vmax.f32 %v2103, 0.0
        %v2116 = vmax.f32 %v2104, 0.0
        %v2117 = vmax.f32 %v2105, 0.0
        %v2118 = vmax.f32 %v2106, 0.0
        %v2119 = vmax.f32 %v2107, 0.0
        %v2120 = vmax.f32 %v2108, 0.0
        %v2121 = vmax.f32 %v2109, 0.0
        %v2122 = vmax.f32 %v2110, 0.0
        %v2123 = vmax.f32 %v2111, 0.0
        %v2124 = vmax.f32 %v2112, 0.0
        %v2125 = vmax.f32 %v2113, 0.0
        %2126 = vst [vmem:[#allocation2 + $0x120] sm:$0xff] %v2114
        %2127 = vst [vmem:[#allocation2 + $0x128] sm:$0xff] %v2115
        %2128 = vst [vmem:[#allocation2 + $0x130] sm:$0xff] %v2116
        %2129 = vst [vmem:[#allocation2 + $0x138] sm:$0xff] %v2117
        %2130 = vst [vmem:[#allocation2 + $0x140] sm:$0xff] %v2118
        %2131 = vst [vmem:[#allocation2 + $0x148] sm:$0xff] %v2119
        %2132 = vst [vmem:[#allocation2 + $0x150] sm:$0xff] %v2120
        %2133 = vst [vmem:[#allocation2 + $0x158] sm:$0xff] %v2121
        %2134 = vst [vmem:[#allocation2 + $0x160] sm:$0xff] %v2122
        %2135 = vst [vmem:[#allocation2 + $0x168] sm:$0xff] %v2123
        %2136 = vst [vmem:[#allocation2 + $0x170] sm:$0xff] %v2124
        %2137 = vst [vmem:[#allocation2 + $0x178] sm:$0xff] %v2125
        %v2138 = vld [vmem:[%s3] sm:$0xff]
        %v2139 = vld [vmem:[%s3 + $0x8] sm:$0xff]
        %v2140 = vld [vmem:[%s3 + $0x10] sm:$0xff]
        %v2141 = vld [vmem:[%s3 + $0x18] sm:$0xff]
        %v2142 = vld [vmem:[%s3 + $0x20] sm:$0xff]
        %v2143 = vld [vmem:[%s3 + $0x28] sm:$0xff]
        %v2144 = vld [vmem:[%s3 + $0x30] sm:$0xff]
        %v2145 = vld [vmem:[%s3 + $0x38] sm:$0xff]
        %v2146 = vld [vmem:[%s3 + $0x40] sm:$0xff]
        %v2147 = vld [vmem:[%s3 + $0x48] sm:$0xff]
        %v2148 = vld [vmem:[%s3 + $0x50] sm:$0xff]
        %v2149 = vld [vmem:[%s3 + $0x58] sm:$0xff]
        %v2150 = vld [vmem:[%s3 + $0x60] sm:$0xff]
        %v2151 = vld [vmem:[%s3 + $0x68] sm:$0xff]
        %v2152 = vld [vmem:[%s3 + $0x70] sm:$0xff]
        %v2153 = vld [vmem:[%s3 + $0x78] sm:$0xff]
        %v2154 = vld [vmem:[%s3 + $0x80] sm:$0xff]
        %v2155 = vld [vmem:[%s3 + $0x88] sm:$0xff]
        %v2156 = vld [vmem:[%s3 + $0x90] sm:$0xff]
        %v2157 = vld [vmem:[%s3 + $0x98] sm:$0xff]
        %v2158 = vld [vmem:[%s3 + $0xa0] sm:$0xff]
        %v2159 = vld [vmem:[%s3 + $0xa8] sm:$0xff]
        %v2160 = vld [vmem:[%s3 + $0xb0] sm:$0xff]
        %v2161 = vld [vmem:[%s3 + $0xb8] sm:$0xff]
        %v2162 = vld [vmem:[%s3 + $0xc0] sm:$0xff]
        %v2163 = vld [vmem:[%s3 + $0xc8] sm:$0xff]
        %v2164 = vld [vmem:[%s3 + $0xd0] sm:$0xff]
        %v2165 = vld [vmem:[%s3 + $0xd8] sm:$0xff]
        %v2166 = vld [vmem:[%s3 + $0xe0] sm:$0xff]
        %v2167 = vld [vmem:[%s3 + $0xe8] sm:$0xff]
        %v2168 = vld [vmem:[%s3 + $0xf0] sm:$0xff]
        %v2169 = vld [vmem:[%s3 + $0xf8] sm:$0xff]
        %v2170 = vld [vmem:[%s3 + $0x100] sm:$0xff]
        %v2171 = vld [vmem:[%s3 + $0x108] sm:$0xff]
        %v2172 = vld [vmem:[%s3 + $0x110] sm:$0xff]
        %v2173 = vld [vmem:[%s3 + $0x118] sm:$0xff]
        %v2174 = vld [vmem:[#allocation2 + $0x120] sm:$0xff]
        %v2175 = vld [vmem:[#allocation2 + $0x128] sm:$0xff]
        %v2176 = vld [vmem:[#allocation2 + $0x130] sm:$0xff]
        %v2177 = vld [vmem:[#allocation2 + $0x138] sm:$0xff]
        %v2178 = vld [vmem:[#allocation2 + $0x140] sm:$0xff]
        %v2179 = vld [vmem:[#allocation2 + $0x148] sm:$0xff]
        %v2180 = vld [vmem:[#allocation2 + $0x150] sm:$0xff]
        %v2181 = vld [vmem:[#allocation2 + $0x158] sm:$0xff]
        %v2182 = vld [vmem:[#allocation2 + $0x160] sm:$0xff]
        %v2183 = vld [vmem:[#allocation2 + $0x168] sm:$0xff]
        %v2184 = vld [vmem:[#allocation2 + $0x170] sm:$0xff]
        %v2185 = vld [vmem:[#allocation2 + $0x178] sm:$0xff]
        %v2186 = vld [vmem:[#allocation2 + $0x180] sm:$0xff]
        %v2187 = vld [vmem:[#allocation2 + $0x188] sm:$0xff]
        %v2188 = vld [vmem:[#allocation2 + $0x190] sm:$0xff]
        %v2189 = vld [vmem:[#allocation2 + $0x198] sm:$0xff]
        %v2190 = vld [vmem:[#allocation2 + $0x1a0] sm:$0xff]
        %v2191 = vld [vmem:[#allocation2 + $0x1a8] sm:$0xff]
        %v2192 = vld [vmem:[#allocation2 + $0x1b0] sm:$0xff]
        %v2193 = vld [vmem:[#allocation2 + $0x1b8] sm:$0xff]
        %v2194 = vld [vmem:[#allocation2 + $0x1c0] sm:$0xff]
        %v2195 = vld [vmem:[#allocation2 + $0x1c8] sm:$0xff]
        %v2196 = vld [vmem:[#allocation2 + $0x1d0] sm:$0xff]
        %v2197 = vld [vmem:[#allocation2 + $0x1d8] sm:$0xff]
        %v2198 = vld [vmem:[#allocation2 + $0x1e0] sm:$0xff]
        %vm2199 = vcmask 588800
        %v2201 = vsel %vm2199, %v2139, 0
        %v2204 = vsel %vm2199, %v2141, 0
        %v2207 = vsel %vm2199, %v2143, 0
        %v2210 = vsel %vm2199, %v2145, 0
        %v2213 = vsel %vm2199, %v2147, 0
        %v2216 = vsel %vm2199, %v2149, 0
        %v2219 = vsel %vm2199, %v2151, 0
        %v2222 = vsel %vm2199, %v2153, 0
        %v2225 = vsel %vm2199, %v2155, 0
        %v2228 = vsel %vm2199, %v2157, 0
        %v2231 = vsel %vm2199, %v2159, 0
        %v2234 = vsel %vm2199, %v2161, 0
        %v2237 = vsel %vm2199, %v2163, 0
        %v2240 = vsel %vm2199, %v2165, 0
        %v2243 = vsel %vm2199, %v2167, 0
        %v2246 = vsel %vm2199, %v2169, 0
        %v2249 = vsel %vm2199, %v2171, 0
        %v2252 = vsel %vm2199, %v2173, 0
        %2254 = vmatpush.msra.mxu0 %v2189
        %2255 = vmatpush.msra.mxu0 %v2188
        %2256 = vmatpush.msra.mxu0 %v2187
        %2257 = vmatpush.msra.mxu0 %v2186
        %2258 = vmatpush.msra.mxu0 %v2185
        %2259 = vmatpush.msra.mxu0 %v2184
        %2260 = vmatpush.msra.mxu0 %v2183
        %2261 = vmatpush.msra.mxu0 %v2182
        %2262 = vmatpush.msra.mxu0 %v2181
        %2263 = vmatpush.msra.mxu0 %v2180
        %2264 = vmatpush.msra.mxu0 %v2179
        %2265 = vmatpush.msra.mxu0 %v2178
        %2266 = vmatpush.msra.mxu0 %v2177
        %2267 = vmatpush.msra.mxu0 %v2176
        %2268 = vmatpush.msra.mxu0 %v2175
        %2269 = vmatpush.msra.mxu0 %v2174
        %2270 = vmatmul.f32.gmra.mxu0 %v2138
        %v2271 = vpop.f32.mrf.mxu0
        %v2272 = vadd.f32 0.0, %v2271
        %2273 = vmatmul.f32.gmra.mxu0 %v2140
        %v2274 = vpop.f32.mrf.mxu0
        %v2275 = vadd.f32 0.0, %v2274
        %2276 = vmatmul.f32.gmra.mxu0 %v2142
        %v2277 = vpop.f32.mrf.mxu0
        %v2278 = vadd.f32 0.0, %v2277
        %2279 = vmatmul.f32.gmra.mxu0 %v2144
        %v2280 = vpop.f32.mrf.mxu0
        %v2281 = vadd.f32 0.0, %v2280
        %2282 = vmatmul.f32.gmra.mxu0 %v2146
        %v2283 = vpop.f32.mrf.mxu0
        %v2284 = vadd.f32 0.0, %v2283
        %2285 = vmatmul.f32.gmra.mxu0 %v2148
        %v2286 = vpop.f32.mrf.mxu0
        %v2287 = vadd.f32 0.0, %v2286
        %2288 = vmatmul.f32.gmra.mxu0 %v2150
        %v2289 = vpop.f32.mrf.mxu0
        %v2290 = vadd.f32 0.0, %v2289
        %2291 = vmatmul.f32.gmra.mxu0 %v2152
        %v2292 = vpop.f32.mrf.mxu0
        %v2293 = vadd.f32 0.0, %v2292
        %2294 = vmatmul.f32.gmra.mxu0 %v2154
        %v2295 = vpop.f32.mrf.mxu0
        %v2296 = vadd.f32 0.0, %v2295
        %2297 = vmatmul.f32.gmra.mxu0 %v2156
        %v2298 = vpop.f32.mrf.mxu0
        %v2299 = vadd.f32 0.0, %v2298
        %2300 = vmatmul.f32.gmra.mxu0 %v2158
        %v2301 = vpop.f32.mrf.mxu0
        %v2302 = vadd.f32 0.0, %v2301
        %2303 = vmatmul.f32.gmra.mxu0 %v2160
        %v2304 = vpop.f32.mrf.mxu0
        %v2305 = vadd.f32 0.0, %v2304
        %2306 = vmatmul.f32.gmra.mxu0 %v2162
        %v2307 = vpop.f32.mrf.mxu0
        %v2308 = vadd.f32 0.0, %v2307
        %2309 = vmatmul.f32.gmra.mxu0 %v2164
        %v2310 = vpop.f32.mrf.mxu0
        %v2311 = vadd.f32 0.0, %v2310
        %2312 = vmatmul.f32.gmra.mxu0 %v2166
        %v2313 = vpop.f32.mrf.mxu0
        %v2314 = vadd.f32 0.0, %v2313
        %2315 = vmatmul.f32.gmra.mxu0 %v2168
        %v2316 = vpop.f32.mrf.mxu0
        %v2317 = vadd.f32 0.0, %v2316
        %2318 = vmatmul.f32.gmra.mxu0 %v2170
        %v2319 = vpop.f32.mrf.mxu0
        %v2320 = vadd.f32 0.0, %v2319
        %2321 = vmatmul.f32.gmra.mxu0 %v2172
        %v2322 = vpop.f32.mrf.mxu0
        %v2323 = vadd.f32 0.0, %v2322
        %2324 = vdwg.mxu0
        %2325 = vmatpush.msra.mxu0 0.0
        %2326 = vmatpush.msra.mxu0 0.0
        %2327 = vmatpush.msra.mxu0 0.0
        %2328 = vmatpush.msra.mxu0 0.0
        %2329 = vmatpush.msra.mxu0 0.0
        %2330 = vmatpush.msra.mxu0 0.0
        %2331 = vmatpush.msra.mxu0 0.0
        %2332 = vmatpush.msra.mxu0 %v2198
        %2333 = vmatpush.msra.mxu0 %v2197
        %2334 = vmatpush.msra.mxu0 %v2196
        %2335 = vmatpush.msra.mxu0 %v2195
        %2336 = vmatpush.msra.mxu0 %v2194
        %2337 = vmatpush.msra.mxu0 %v2193
        %2338 = vmatpush.msra.mxu0 %v2192
        %2339 = vmatpush.msra.mxu0 %v2191
        %2340 = vmatpush.msra.mxu0 %v2190
        %2341 = vmatmul.f32.gmra.mxu0 %v2201
        %v2342 = vpop.f32.mrf.mxu0
        %v2343 = vadd.f32 %v2272, %v2342
        %2344 = vmatmul.f32.gmra.mxu0 %v2204
        %v2345 = vpop.f32.mrf.mxu0
        %v2346 = vadd.f32 %v2275, %v2345
        %2347 = vmatmul.f32.gmra.mxu0 %v2207
        %v2348 = vpop.f32.mrf.mxu0
        %v2349 = vadd.f32 %v2278, %v2348
        %2350 = vmatmul.f32.gmra.mxu0 %v2210
        %v2351 = vpop.f32.mrf.mxu0
        %v2352 = vadd.f32 %v2281, %v2351
        %2353 = vmatmul.f32.gmra.mxu0 %v2213
        %v2354 = vpop.f32.mrf.mxu0
        %v2355 = vadd.f32 %v2284, %v2354
        %2356 = vmatmul.f32.gmra.mxu0 %v2216
        %v2357 = vpop.f32.mrf.mxu0
        %v2358 = vadd.f32 %v2287, %v2357
        %2359 = vmatmul.f32.gmra.mxu0 %v2219
        %v2360 = vpop.f32.mrf.mxu0
        %v2361 = vadd.f32 %v2290, %v2360
        %2362 = vmatmul.f32.gmra.mxu0 %v2222
        %v2363 = vpop.f32.mrf.mxu0
        %v2364 = vadd.f32 %v2293, %v2363
        %2365 = vmatmul.f32.gmra.mxu0 %v2225
        %v2366 = vpop.f32.mrf.mxu0
        %v2367 = vadd.f32 %v2296, %v2366
        %2368 = vmatmul.f32.gmra.mxu0 %v2228
        %v2369 = vpop.f32.mrf.mxu0
        %v2370 = vadd.f32 %v2299, %v2369
        %2371 = vmatmul.f32.gmra.mxu0 %v2231
        %v2372 = vpop.f32.mrf.mxu0
        %v2373 = vadd.f32 %v2302, %v2372
        %2374 = vmatmul.f32.gmra.mxu0 %v2234
        %v2375 = vpop.f32.mrf.mxu0
        %v2376 = vadd.f32 %v2305, %v2375
        %2377 = vmatmul.f32.gmra.mxu0 %v2237
        %v2378 = vpop.f32.mrf.mxu0
        %v2379 = vadd.f32 %v2308, %v2378
        %2380 = vmatmul.f32.gmra.mxu0 %v2240
        %v2381 = vpop.f32.mrf.mxu0
        %v2382 = vadd.f32 %v2311, %v2381
        %2383 = vmatmul.f32.gmra.mxu0 %v2243
        %v2384 = vpop.f32.mrf.mxu0
        %v2385 = vadd.f32 %v2314, %v2384
        %2386 = vmatmul.f32.gmra.mxu0 %v2246
        %v2387 = vpop.f32.mrf.mxu0
        %v2388 = vadd.f32 %v2317, %v2387
        %2389 = vmatmul.f32.gmra.mxu0 %v2249
        %v2390 = vpop.f32.mrf.mxu0
        %v2391 = vadd.f32 %v2320, %v2390
        %2392 = vmatmul.f32.gmra.mxu0 %v2252
        %v2393 = vpop.f32.mrf.mxu0
        %v2394 = vadd.f32 %v2323, %v2393
        %2395 = vdwg.mxu0
        %2396 = vst [vmem:[%s258] sm:$0xff] %v2343
        %2397 = vst [vmem:[%s258 + $0x8] sm:$0xff] %v2346
        %2398 = vst [vmem:[%s258 + $0x10] sm:$0xff] %v2349
        %2399 = vst [vmem:[%s258 + $0x18] sm:$0xff] %v2352
        %2400 = vst [vmem:[%s258 + $0x20] sm:$0xff] %v2355
        %2401 = vst [vmem:[%s258 + $0x28] sm:$0xff] %v2358
        %2402 = vst [vmem:[%s258 + $0x30] sm:$0xff] %v2361
        %2403 = vst [vmem:[%s258 + $0x38] sm:$0xff] %v2364
        %2404 = vst [vmem:[%s258 + $0x40] sm:$0xff] %v2367
        %2405 = vst [vmem:[%s258 + $0x48] sm:$0xff] %v2370
        %2406 = vst [vmem:[%s258 + $0x50] sm:$0xff] %v2373
        %2407 = vst [vmem:[%s258 + $0x58] sm:$0xff] %v2376
        %2408 = vst [vmem:[%s258 + $0x60] sm:$0xff] %v2379
        %2409 = vst [vmem:[%s258 + $0x68] sm:$0xff] %v2382
        %2410 = vst [vmem:[%s258 + $0x70] sm:$0xff] %v2385
        %2411 = vst [vmem:[%s258 + $0x78] sm:$0xff] %v2388
        %2412 = vst [vmem:[%s258 + $0x80] sm:$0xff] %v2391
        %2413 = vst [vmem:[%s258 + $0x88] sm:$0xff] %v2394
        %v2414 = vld [vmem:[#allocation2 + $0x1e8] sm:$0xff]
        %v2415 = vld [vmem:[#allocation2 + $0x1f0] sm:$0xff]
        %v2416 = vld [vmem:[#allocation2 + $0x1f8] sm:$0xff]
        %v2417 = vld [vmem:[#allocation2 + $0x200] sm:$0xff]
        %v2418 = vld [vmem:[#allocation2 + $0x208] sm:$0xff]
        %v2419 = vld [vmem:[#allocation2 + $0x210] sm:$0xff]
        %2420 = vst [vmem:[%s258 + $0x90] sm:$0xff] %v2414
        %2421 = vst [vmem:[%s258 + $0x98] sm:$0xff] %v2415
        %2422 = vst [vmem:[%s258 + $0xa0] sm:$0xff] %v2416
        %2423 = vst [vmem:[%s258 + $0xa8] sm:$0xff] %v2417
        %2424 = vst [vmem:[%s258 + $0xb0] sm:$0xff] %v2418
        %2425 = vst [vmem:[%s258 + $0xb8] sm:$0xff] %v2419
        %s2426 = sand.u32 %s112, 1
        %s2427 = sand.u32 %s112, 1
        %s2428 = smul.addr %s2427, 192
        %s2429 = scalar_lea.vmem [#allocation4], %s2428
        // Predicated region
        $region75: #{part_agcn_tcn_forward.1} parent=69 // pred_check
          %p2430 = pneg %p122
        $region76: #{part_agcn_tcn_forward.1} parent=69 // pred_check_branch
          %2432 = sbr.rel (%p2430) target = $region78
        $region77: #{part_agcn_tcn_forward.1} parent=69 // pred_region
          %s2433 = smul.addr %s15, 8
          %s2434 = scalar_lea.vmem %s4, %s2433
          // Predicated region
          $region79: #{part_agcn_tcn_forward.1} parent=77 // pred_check
            _
          $region80: #{part_agcn_tcn_forward.1} parent=77 // pred_check_branch
            %2436 = sbr.rel (0) target = $region82
          $region81: #{part_agcn_tcn_forward.1} parent=77 // pred_region
            // Predicated region
            $region83: #{part_agcn_tcn_forward.1} parent=81 // pred_check
              _
            $region84: #{part_agcn_tcn_forward.1} parent=81 // pred_check_branch
              %2438 = sbr.rel (0) target = $region86
            $region85: #{part_agcn_tcn_forward.1} parent=81 // pred_region
              // Predicated region
              $region98: #{part_agcn_tcn_forward.1} parent=85 // pred_check
                _
              $region99: #{part_agcn_tcn_forward.1} parent=85 // pred_check_branch
                %2500 = sbr.rel (0) target = $region101
              $region100: #{part_agcn_tcn_forward.1} parent=85 // pred_region
                loop: start=0, step=1, limit=1
                $region102: #{part_agcn_tcn_forward.1} parent=100 // loop_pre_header
                  _
                $region103: #{part_agcn_tcn_forward.1} parent=100 // loop_header
                  %s2502 = sphi 0, %s2506
                  %p2503 = scmp.ge.s32.totalorder %s2502, 1
                  %s2507 = sphi %s2429, %s2429
                  %s2508 = sphi %s2434, %s2434
                $region104: #{part_agcn_tcn_forward.1} parent=100 // loop_header_branch
                  %2505 = sbr.rel (%p2503) target = $region108
                $region105: #{part_agcn_tcn_forward.1} parent=100 // loop_body
                  %v2509 = vld [vmem:[%s2507] sm:$0xff]
                  %2510 = vst [vmem:[%s2508] sm:$0xff] %v2509
                  %v2511 = vld [vmem:[%s2507 + $0x8] sm:$0xff]
                  %2512 = vst [vmem:[%s2508 + $0x10] sm:$0xff] %v2511
                  %v2513 = vld [vmem:[%s2507 + $0x10] sm:$0xff]
                  %2514 = vst [vmem:[%s2508 + $0x20] sm:$0xff] %v2513
                  %v2515 = vld [vmem:[%s2507 + $0x18] sm:$0xff]
                  %2516 = vst [vmem:[%s2508 + $0x30] sm:$0xff] %v2515
                  %v2517 = vld [vmem:[%s2507 + $0x20] sm:$0xff]
                  %2518 = vst [vmem:[%s2508 + $0x40] sm:$0xff] %v2517
                  %v2519 = vld [vmem:[%s2507 + $0x28] sm:$0xff]
                  %2520 = vst [vmem:[%s2508 + $0x50] sm:$0xff] %v2519
                  %v2521 = vld [vmem:[%s2507 + $0x30] sm:$0xff]
                  %2522 = vst [vmem:[%s2508 + $0x60] sm:$0xff] %v2521
                  %v2523 = vld [vmem:[%s2507 + $0x38] sm:$0xff]
                  %2524 = vst [vmem:[%s2508 + $0x70] sm:$0xff] %v2523
                  %v2525 = vld [vmem:[%s2507 + $0x40] sm:$0xff]
                  %2526 = vst [vmem:[%s2508 + $0x80] sm:$0xff] %v2525
                  %v2527 = vld [vmem:[%s2507 + $0x48] sm:$0xff]
                  %2528 = vst [vmem:[%s2508 + $0x90] sm:$0xff] %v2527
                  %v2529 = vld [vmem:[%s2507 + $0x50] sm:$0xff]
                  %2530 = vst [vmem:[%s2508 + $0xa0] sm:$0xff] %v2529
                  %v2531 = vld [vmem:[%s2507 + $0x58] sm:$0xff]
                  %2532 = vst [vmem:[%s2508 + $0xb0] sm:$0xff] %v2531
                  %v2533 = vld [vmem:[%s2507 + $0x60] sm:$0xff]
                  %2534 = vst [vmem:[%s2508 + $0xc0] sm:$0xff] %v2533
                  %v2535 = vld [vmem:[%s2507 + $0x68] sm:$0xff]
                  %2536 = vst [vmem:[%s2508 + $0xd0] sm:$0xff] %v2535
                  %v2537 = vld [vmem:[%s2507 + $0x70] sm:$0xff]
                  %2538 = vst [vmem:[%s2508 + $0xe0] sm:$0xff] %v2537
                  %v2539 = vld [vmem:[%s2507 + $0x78] sm:$0xff]
                  %2540 = vst [vmem:[%s2508 + $0xf0] sm:$0xff] %v2539
                  %v2541 = vld [vmem:[%s2507 + $0x80] sm:$0xff]
                  %2542 = vst [vmem:[%s2508 + $0x100] sm:$0xff] %v2541
                  %v2543 = vld [vmem:[%s2507 + $0x88] sm:$0xff]
                  %2544 = vst [vmem:[%s2508 + $0x110] sm:$0xff] %v2543
                  %v2545 = vld [vmem:[%s2507 + $0x90] sm:$0xff]
                  %2546 = vst [vmem:[%s2508 + $0x120] sm:$0xff] %v2545
                  %v2547 = vld [vmem:[%s2507 + $0x98] sm:$0xff]
                  %2548 = vst [vmem:[%s2508 + $0x130] sm:$0xff] %v2547
                  %v2549 = vld [vmem:[%s2507 + $0xa0] sm:$0xff]
                  %2550 = vst [vmem:[%s2508 + $0x140] sm:$0xff] %v2549
                  %v2551 = vld [vmem:[%s2507 + $0xa8] sm:$0xff]
                  %2552 = vst [vmem:[%s2508 + $0x150] sm:$0xff] %v2551
                  %v2553 = vld [vmem:[%s2507 + $0xb0] sm:$0xff]
                  %2554 = vst [vmem:[%s2508 + $0x160] sm:$0xff] %v2553
                  %v2555 = vld [vmem:[%s2507 + $0xb8] sm:$0xff]
                  %2556 = vst [vmem:[%s2508 + $0x170] sm:$0xff] %v2555
                $region106: #{part_agcn_tcn_forward.1} parent=100 // loop_footer
                  %s2506 = sadd.s32 1, %s2502
                $region107: #{part_agcn_tcn_forward.1} parent=100 // loop_footer_branch
                  %2501 = sbr.rel target = $region103
                $region108: #{part_agcn_tcn_forward.1} parent=100 // loop_exit
                  _
              $region101: #{part_agcn_tcn_forward.1} parent=85 // pred_fallthru
                _
              // Predicated region
              $region109: #{part_agcn_tcn_forward.1} parent=85 // pred_check
                _
              $region110: #{part_agcn_tcn_forward.1} parent=85 // pred_check_branch
                %2558 = sbr.rel target = $region112
              $region111: #{part_agcn_tcn_forward.1} parent=85 // pred_region
                _
              $region112: #{part_agcn_tcn_forward.1} parent=85 // pred_fallthru
                _
            $region86: #{part_agcn_tcn_forward.1} parent=81 // pred_fallthru
              _
            // Predicated region
            $region87: #{part_agcn_tcn_forward.1} parent=81 // pred_check
              _
            $region88: #{part_agcn_tcn_forward.1} parent=81 // pred_check_branch
              %2440 = sbr.rel target = $region90
            $region89: #{part_agcn_tcn_forward.1} parent=81 // pred_region
              %s2442 = ssub.s32 256, 1
              loop: start=0, step=1, limit=1
              $region91: #{part_agcn_tcn_forward.1} parent=89 // loop_pre_header
                _
              $region92: #{part_agcn_tcn_forward.1} parent=89 // loop_header
                %s2444 = sphi 0, %s2448
                %p2445 = scmp.ge.s32.totalorder %s2444, 1
                %s2449 = sphi %s2429, %s2429
                %s2450 = sphi %s2434, %s2434
              $region93: #{part_agcn_tcn_forward.1} parent=89 // loop_header_branch
                %2447 = sbr.rel (%p2445) target = $region97
              $region94: #{part_agcn_tcn_forward.1} parent=89 // loop_body
                %v2451 = vld [vmem:[%s2449] sm:%s2442]
                %2452 = vst [vmem:[%s2450] sm:%s2442] %v2451
                %v2453 = vld [vmem:[%s2449 + $0x8] sm:%s2442]
                %2454 = vst [vmem:[%s2450 + $0x10] sm:%s2442] %v2453
                %v2455 = vld [vmem:[%s2449 + $0x10] sm:%s2442]
                %2456 = vst [vmem:[%s2450 + $0x20] sm:%s2442] %v2455
                %v2457 = vld [vmem:[%s2449 + $0x18] sm:%s2442]
                %2458 = vst [vmem:[%s2450 + $0x30] sm:%s2442] %v2457
                %v2459 = vld [vmem:[%s2449 + $0x20] sm:%s2442]
                %2460 = vst [vmem:[%s2450 + $0x40] sm:%s2442] %v2459
                %v2461 = vld [vmem:[%s2449 + $0x28] sm:%s2442]
                %2462 = vst [vmem:[%s2450 + $0x50] sm:%s2442] %v2461
                %v2463 = vld [vmem:[%s2449 + $0x30] sm:%s2442]
                %2464 = vst [vmem:[%s2450 + $0x60] sm:%s2442] %v2463
                %v2465 = vld [vmem:[%s2449 + $0x38] sm:%s2442]
                %2466 = vst [vmem:[%s2450 + $0x70] sm:%s2442] %v2465
                %v2467 = vld [vmem:[%s2449 + $0x40] sm:%s2442]
                %2468 = vst [vmem:[%s2450 + $0x80] sm:%s2442] %v2467
                %v2469 = vld [vmem:[%s2449 + $0x48] sm:%s2442]
                %2470 = vst [vmem:[%s2450 + $0x90] sm:%s2442] %v2469
                %v2471 = vld [vmem:[%s2449 + $0x50] sm:%s2442]
                %2472 = vst [vmem:[%s2450 + $0xa0] sm:%s2442] %v2471
                %v2473 = vld [vmem:[%s2449 + $0x58] sm:%s2442]
                %2474 = vst [vmem:[%s2450 + $0xb0] sm:%s2442] %v2473
                %v2475 = vld [vmem:[%s2449 + $0x60] sm:%s2442]
                %2476 = vst [vmem:[%s2450 + $0xc0] sm:%s2442] %v2475
                %v2477 = vld [vmem:[%s2449 + $0x68] sm:%s2442]
                %2478 = vst [vmem:[%s2450 + $0xd0] sm:%s2442] %v2477
                %v2479 = vld [vmem:[%s2449 + $0x70] sm:%s2442]
                %2480 = vst [vmem:[%s2450 + $0xe0] sm:%s2442] %v2479
                %v2481 = vld [vmem:[%s2449 + $0x78] sm:%s2442]
                %2482 = vst [vmem:[%s2450 + $0xf0] sm:%s2442] %v2481
                %v2483 = vld [vmem:[%s2449 + $0x80] sm:%s2442]
                %2484 = vst [vmem:[%s2450 + $0x100] sm:%s2442] %v2483
                %v2485 = vld [vmem:[%s2449 + $0x88] sm:%s2442]
                %2486 = vst [vmem:[%s2450 + $0x110] sm:%s2442] %v2485
                %v2487 = vld [vmem:[%s2449 + $0x90] sm:%s2442]
                %2488 = vst [vmem:[%s2450 + $0x120] sm:%s2442] %v2487
                %v2489 = vld [vmem:[%s2449 + $0x98] sm:%s2442]
                %2490 = vst [vmem:[%s2450 + $0x130] sm:%s2442] %v2489
                %v2491 = vld [vmem:[%s2449 + $0xa0] sm:%s2442]
                %2492 = vst [vmem:[%s2450 + $0x140] sm:%s2442] %v2491
                %v2493 = vld [vmem:[%s2449 + $0xa8] sm:%s2442]
                %2494 = vst [vmem:[%s2450 + $0x150] sm:%s2442] %v2493
                %v2495 = vld [vmem:[%s2449 + $0xb0] sm:%s2442]
                %2496 = vst [vmem:[%s2450 + $0x160] sm:%s2442] %v2495
                %v2497 = vld [vmem:[%s2449 + $0xb8] sm:%s2442]
                %2498 = vst [vmem:[%s2450 + $0x170] sm:%s2442] %v2497
              $region95: #{part_agcn_tcn_forward.1} parent=89 // loop_footer
                %s2448 = sadd.s32 1, %s2444
              $region96: #{part_agcn_tcn_forward.1} parent=89 // loop_footer_branch
                %2443 = sbr.rel target = $region92
              $region97: #{part_agcn_tcn_forward.1} parent=89 // loop_exit
                _
            $region90: #{part_agcn_tcn_forward.1} parent=81 // pred_fallthru
              _
          $region82: #{part_agcn_tcn_forward.1} parent=77 // pred_fallthru
            _
          %2559 = vnop
        $region78: #{part_agcn_tcn_forward.1} parent=69 // pred_fallthru
          _
      $region70: #{part_agcn_tcn_forward.1} parent=5 // pred_fallthru
        _
      %p2560 = scmp.le.s32.totalorder 2, %s10
      // Predicated region
      $region113: #{part_agcn_tcn_forward.1} parent=5 // pred_check
        %p2561 = pneg %p2560
      $region114: #{part_agcn_tcn_forward.1} parent=5 // pred_check_branch
        %2563 = sbr.rel (%p2561) target = $region116
      $region115: #{part_agcn_tcn_forward.1} parent=5 // pred_region
        %s2564 = ssub.s32 %s10, 2
        // Predicated region
        $region117: #{part_agcn_tcn_forward.1} parent=115 // pred_check
          %p2565 = pneg %p128
        $region118: #{part_agcn_tcn_forward.1} parent=115 // pred_check_branch
          %2567 = sbr.rel (%p2565) target = $region120
        $region119: #{part_agcn_tcn_forward.1} parent=115 // pred_region
          %s2568 = sand.u32 %s113, 1
          %s2569 = sand.u32 %s113, 1
          %s2570 = smul.addr %s2569, 192
          %s2571 = scalar_lea.vmem [#allocation4], %s2570
        $region120: #{part_agcn_tcn_forward.1} parent=115 // pred_fallthru
          _
      $region116: #{part_agcn_tcn_forward.1} parent=5 // pred_fallthru
        _
    $region6: #{part_agcn_tcn_forward.1} parent=1 // loop_footer
      %s14 = sadd.s32 1, %s10
    $region7: #{part_agcn_tcn_forward.1} parent=1 // loop_footer_branch
      %9 = sbr.rel target = $region3
    $region8: #{part_agcn_tcn_forward.1} parent=1 // loop_exit
      _

</llo_original>
